<compile_context>
chip_gen: v7x
topology: tpu7x:2x2x1
jax: 0.10.0
libtpu: 0.0.40
codegen_flags: <defaults>
</compile_context>

<pallas_src>
import functools

import jax
import jax.numpy as jnp
from jax import lax
from jax.experimental import pallas as pl
from jax.experimental.pallas import tpu as pltpu

LATENT_SIZE = 100
HIDDEN_SIZE = 256
IMAGE_SIZE = 784

LATENT_PAD = 128   # 100 -> 128: lane-aligned contraction dim for fc1
IMAGE_PAD = 896    # 784 -> 896 = 7*128: lane-dense (unmasked) output stores
BN_EPS = 1e-5


def generator_kernel(x_ref, w1_ref, gamma_ref, beta_ref, w2_ref, b2_ref,
                     o_ref, h_ref, sum_ref, sumsq_ref, *, inv_batch):
    """Two-pass fused generator forward.

    grid = (2, num_batch_tiles):
      pass 0 (p == 0): h = x @ w1 (bf16 MXU, f32 acc); cache h in VMEM scratch
                       and accumulate per-feature sum / sum-of-squares over the
                       FULL batch.
      pass 1 (p == 1): batch-norm (training-mode stats) + ReLU + fc2 + sigmoid.
    Weight BlockSpecs have constant index_maps, so they are DMA'd once and stay
    VMEM-resident across every grid step.
    """
    p = pl.program_id(0)   # 0 = fc1 + stats, 1 = BN + fc2 + sigmoid
    i = pl.program_id(1)   # batch tile index

    @pl.when(p == 0)
    def _fc1_and_stats():
        @pl.when(i == 0)
        def _init():
            sum_ref[...] = jnp.zeros_like(sum_ref)
            sumsq_ref[...] = jnp.zeros_like(sumsq_ref)

        # fc1 WITHOUT bias: training-mode BN subtracts the per-feature batch
        # mean, which cancels any per-feature constant bias exactly.
        h = jnp.dot(x_ref[...], w1_ref[...],
                    preferred_element_type=jnp.float32)
        h_ref[i] = h
        sum_ref[...] += jnp.sum(h, axis=0, keepdims=True)
        sumsq_ref[...] += jnp.sum(h * h, axis=0, keepdims=True)
        # Keep the pass-0 writeback of this output tile deterministic; pass 1
        # overwrites it with the real values.
        o_ref[...] = jnp.zeros_like(o_ref)

    @pl.when(p == 1)
    def _bn_fc2_sigmoid():
        h = h_ref[i]
        mean = sum_ref[...] * inv_batch
        var = sumsq_ref[...] * inv_batch - mean * mean      # one-pass variance
        scale = gamma_ref[...] * lax.rsqrt(var + BN_EPS)
        shift = beta_ref[...] - mean * scale
        a = jnp.maximum(h * scale + shift, 0.0)             # BN + ReLU
        # Dropout(0.2): identity in inference mode (see TODO above).
        y = jnp.dot(a.astype(jnp.bfloat16), w2_ref[...],
                    preferred_element_type=jnp.float32) + b2_ref[...]
        # Sigmoid: exp + approx reciprocal both land on the EUP slot.
        o_ref[...] = pl.reciprocal(1.0 + jnp.exp(-y), approx=True)


def generator_forward(x, w1, b1, gamma, beta, w2, b2, *, batch_tile=8):
    del b1  # cancelled exactly by training-mode BatchNorm (see kernel comment)
    B = x.shape[0]
    assert B >= 2, "training-mode BatchNorm needs batch > 1"
    assert B % batch_tile == 0, "batch must be a multiple of batch_tile"
    nb = B // batch_tile

    lat_pad = LATENT_PAD - LATENT_SIZE
    img_pad = IMAGE_PAD - IMAGE_SIZE

    # Zero-pad ragged dims; weights / activations feed the MXU as bf16.
    xp = jnp.pad(x, ((0, 0), (0, lat_pad))).astype(jnp.bfloat16)
    w1p = jnp.pad(w1, ((0, lat_pad), (0, 0))).astype(jnp.bfloat16)
    w2p = jnp.pad(w2, ((0, 0), (0, img_pad))).astype(jnp.bfloat16)
    b2p = jnp.pad(b2, ((0, 0), (0, img_pad))).astype(jnp.float32)
    gamma = gamma.astype(jnp.float32)
    beta = beta.astype(jnp.float32)

    const = lambda p, i: (0, 0)           # weights: resident across grid steps
    batched = lambda p, i: (i, 0)         # activations: tiled over the batch

    grid_spec = pltpu.PrefetchScalarGridSpec(
        num_scalar_prefetch=0,
        grid=(2, nb),
        in_specs=[
            pl.BlockSpec((batch_tile, LATENT_PAD), batched),   # x
            pl.BlockSpec((LATENT_PAD, HIDDEN_SIZE), const),    # w1
            pl.BlockSpec((1, HIDDEN_SIZE), const),             # gamma
            pl.BlockSpec((1, HIDDEN_SIZE), const),             # beta
            pl.BlockSpec((HIDDEN_SIZE, IMAGE_PAD), const),     # w2
            pl.BlockSpec((1, IMAGE_PAD), const),               # b2
        ],
        out_specs=pl.BlockSpec((batch_tile, IMAGE_PAD), batched),
        scratch_shapes=[
            pltpu.VMEM((nb, batch_tile, HIDDEN_SIZE), jnp.float32),  # fc1 cache
            pltpu.VMEM((1, HIDDEN_SIZE), jnp.float32),               # sum(h)
            pltpu.VMEM((1, HIDDEN_SIZE), jnp.float32),               # sum(h*h)
        ],
    )

    cost = pl.CostEstimate(
        flops=2 * B * (LATENT_PAD * HIDDEN_SIZE + HIDDEN_SIZE * IMAGE_PAD),
        transcendentals=2 * B * IMAGE_PAD,        # exp + approx reciprocal
        bytes_accessed=(xp.size * 2 + w1p.size * 2 + w2p.size * 2
                        + (gamma.size + beta.size + b2p.size) * 4
                        + B * IMAGE_PAD * 4),
    )

    out = pl.pallas_call(
        functools.partial(generator_kernel, inv_batch=1.0 / B),
        out_shape=jax.ShapeDtypeStruct((B, IMAGE_PAD), jnp.float32),
        grid_spec=grid_spec,
        compiler_params=pltpu.CompilerParams(
            # Both axes stay "arbitrary": pass 1 depends on pass 0, and the
            # batch-stat accumulators live in per-core VMEM scratch, so the
            # batch axis must not be sharded across TensorCores.
            dimension_semantics=("arbitrary", "arbitrary"),
        ),
        cost_estimate=cost,
    )(xp, w1p, gamma, beta, w2p, b2p)

    return out[:, :IMAGE_SIZE]


def reference_forward(x, w1, b1, gamma, beta, w2, b2):
    """Pure-JAX f32 reference matching the PyTorch module (train-mode BN)."""
    h = x @ w1 + b1
    mean = jnp.mean(h, axis=0, keepdims=True)
    var = jnp.mean((h - mean) ** 2, axis=0, keepdims=True)
    h = (h - mean) / jnp.sqrt(var + BN_EPS) * gamma + beta
    h = jnp.maximum(h, 0.0)
    y = h @ w2 + b2
    return jax.nn.sigmoid(y)


if __name__ == "__main__":
    key = jax.random.PRNGKey(0)
    k_x, k_w1, k_b1, k_w2, k_b2 = jax.random.split(key, 5)

    B = 32  # small batch, multiple of the 8-row batch tile; >1 for batch-norm

    x = jax.random.normal(k_x, (B, LATENT_SIZE), dtype=jnp.float32)

    # Deterministic synthetic parameters (PyTorch-like uniform fan-in init).
    bound1 = 1.0 / jnp.sqrt(LATENT_SIZE)
    w1 = jax.random.uniform(k_w1, (LATENT_SIZE, HIDDEN_SIZE),
                            minval=-bound1, maxval=bound1, dtype=jnp.float32)
    b1 = jax.random.uniform(k_b1, (1, HIDDEN_SIZE),
                            minval=-bound1, maxval=bound1, dtype=jnp.float32)
    gamma = jnp.ones((1, HIDDEN_SIZE), dtype=jnp.float32)   # bn1.weight
    beta = jnp.zeros((1, HIDDEN_SIZE), dtype=jnp.float32)   # bn1.bias
    bound2 = 1.0 / jnp.sqrt(HIDDEN_SIZE)
    w2 = jax.random.uniform(k_w2, (HIDDEN_SIZE, IMAGE_SIZE),
                            minval=-bound2, maxval=bound2, dtype=jnp.float32)
    b2 = jax.random.uniform(k_b2, (1, IMAGE_SIZE),
                            minval=-bound2, maxval=bound2, dtype=jnp.float32)

    out = generator_forward(x, w1, b1, gamma, beta, w2, b2, batch_tile=8)
    out = jax.block_until_ready(out)

    ref = reference_forward(x, w1, b1, gamma, beta, w2, b2)
    assert out.shape == (B, IMAGE_SIZE)
    # bf16 matmul operands + approx reciprocal => relaxed absolute tolerance
    # (output is bounded in (0,1), so 3e-2 is still a meaningful check).
    assert jnp.allclose(out, ref, atol=3e-2, rtol=0.0), "mismatch vs reference"

    print("KERNEL_OK")
</pallas_src>

<mosaic_0001>
module attributes {stable_mosaic.version = 11 : i64} {
  func.func @generator_kernel(%arg0: i32, %arg1: i32, %arg2: memref<8x128xbf16, #tpu.memory_space<vmem>>, %arg3: memref<128x256xbf16, #tpu.memory_space<vmem>>, %arg4: memref<1x256xf32, #tpu.memory_space<vmem>>, %arg5: memref<1x256xf32, #tpu.memory_space<vmem>>, %arg6: memref<256x896xbf16, #tpu.memory_space<vmem>>, %arg7: memref<1x896xf32, #tpu.memory_space<vmem>>, %arg8: memref<8x896xf32, #tpu.memory_space<vmem>>, %arg9: memref<4x8x256xf32, #tpu.memory_space<vmem>>, %arg10: memref<1x256xf32, #tpu.memory_space<vmem>>, %arg11: memref<1x256xf32, #tpu.memory_space<vmem>>) attributes {dimension_semantics = [#tpu.dimension_semantics<arbitrary>, #tpu.dimension_semantics<arbitrary>], iteration_bounds = array<i64: 2, 4>, scalar_prefetch = 0 : i64, scratch_operands = 3 : i64, tpu.core_type = #tpu.core_type<tc>, window_params = [{transform_indices = @transform_0, window_bounds = array<i64: 8, 128>}, {pipeline_mode = #tpu.pipeline_mode<synchronous>, transform_indices = @transform_1, window_bounds = array<i64: 128, 256>}, {pipeline_mode = #tpu.pipeline_mode<synchronous>, transform_indices = @transform_2, window_bounds = array<i64: 1, 256>}, {pipeline_mode = #tpu.pipeline_mode<synchronous>, transform_indices = @transform_3, window_bounds = array<i64: 1, 256>}, {pipeline_mode = #tpu.pipeline_mode<synchronous>, transform_indices = @transform_4, window_bounds = array<i64: 256, 896>}, {pipeline_mode = #tpu.pipeline_mode<synchronous>, transform_indices = @transform_5, window_bounds = array<i64: 1, 896>}, {transform_indices = @transform_6, window_bounds = array<i64: 8, 896>}]} {
    %c0_i32 = arith.constant 0 : i32
    %0 = arith.cmpi eq, %arg0, %c0_i32 : i32
    %1 = arith.extui %0 : i1 to i32
    %c0_i32_0 = arith.constant 0 : i32
    %2 = arith.cmpi ne, %1, %c0_i32_0 : i32
    scf.if %2 {
      %c0_i32_2 = arith.constant 0 : i32
      %6 = arith.cmpi eq, %arg1, %c0_i32_2 : i32
      %7 = arith.extui %6 : i1 to i32
      %c0_i32_3 = arith.constant 0 : i32
      %8 = arith.cmpi ne, %7, %c0_i32_3 : i32
      scf.if %8 {
        %cst_22 = arith.constant 0.000000e+00 : f32
        %29 = vector.broadcast %cst_22 : f32 to vector<1x256xf32>
        %c0_23 = arith.constant 0 : index
        %c0_24 = arith.constant 0 : index
        %30 = vector.load %arg10[%c0_23, %c0_24] : memref<1x256xf32, #tpu.memory_space<vmem>>, vector<1x256xf32>
        tpu.vector_store %arg10[%c0_23, %c0_24], %29 {strides = array<i32>} : memref<1x256xf32, #tpu.memory_space<vmem>>, vector<1x256xf32>,
        %cst_25 = arith.constant 0.000000e+00 : f32
        %31 = vector.broadcast %cst_25 : f32 to vector<1x256xf32>
        %c0_26 = arith.constant 0 : index
        %c0_27 = arith.constant 0 : index
        %32 = vector.load %arg11[%c0_26, %c0_27] : memref<1x256xf32, #tpu.memory_space<vmem>>, vector<1x256xf32>
        tpu.vector_store %arg11[%c0_26, %c0_27], %31 {strides = array<i32>} : memref<1x256xf32, #tpu.memory_space<vmem>>, vector<1x256xf32>,
      } else {
      }
      %c0 = arith.constant 0 : index
      %c0_4 = arith.constant 0 : index
      %9 = vector.load %arg2[%c0, %c0_4] : memref<8x128xbf16, #tpu.memory_space<vmem>>, vector<8x128xbf16>
      %c0_5 = arith.constant 0 : index
      %c0_6 = arith.constant 0 : index
      %10 = vector.load %arg3[%c0_5, %c0_6] : memref<128x256xbf16, #tpu.memory_space<vmem>>, vector<128x256xbf16>
      %cst = arith.constant dense<0.000000e+00> : vector<8x256xf32>
      %11 = tpu.matmul %9, %10, %cst {dimension_numbers = #tpu.dot_dimension_numbers<[1], [0], [0], [1], [0, 0, 1, 1], [], []>} : vector<8x128xbf16>, vector<128x256xbf16>, vector<8x256xf32> -> vector<8x256xf32>
      %12 = arith.index_cast %arg1 : i32 to index
      %c0_7 = arith.constant 0 : index
      %c0_8 = arith.constant 0 : index
      %13 = vector.load %arg9[%12, %c0_7, %c0_8] : memref<4x8x256xf32, #tpu.memory_space<vmem>>, vector<1x8x256xf32>
      %14 = vector.shape_cast %13 : vector<1x8x256xf32> to vector<8x256xf32>
      %15 = vector.shape_cast %11 : vector<8x256xf32> to vector<1x8x256xf32>
      tpu.vector_store %arg9[%12, %c0_7, %c0_8], %15 {strides = array<i32>} : memref<4x8x256xf32, #tpu.memory_space<vmem>>, vector<1x8x256xf32>,
      %c0_9 = arith.constant 0 : index
      %c0_10 = arith.constant 0 : index
      %16 = vector.load %arg10[%c0_9, %c0_10] : memref<1x256xf32, #tpu.memory_space<vmem>>, vector<1x256xf32>
      %cst_11 = arith.constant dense<0.000000e+00> : vector<256xf32>
      %17 = vector.multi_reduction <add>, %11, %cst_11 [0] : vector<8x256xf32> to vector<256xf32>
      %18 = vector.shape_cast %17 : vector<256xf32> to vector<1x256xf32>
      %19 = arith.addf %16, %18 : vector<1x256xf32>
      %c0_12 = arith.constant 0 : index
      %c0_13 = arith.constant 0 : index
      %20 = vector.load %arg10[%c0_12, %c0_13] : memref<1x256xf32, #tpu.memory_space<vmem>>, vector<1x256xf32>
      tpu.vector_store %arg10[%c0_12, %c0_13], %19 {strides = array<i32>} : memref<1x256xf32, #tpu.memory_space<vmem>>, vector<1x256xf32>,
      %c0_14 = arith.constant 0 : index
      %c0_15 = arith.constant 0 : index
      %21 = vector.load %arg11[%c0_14, %c0_15] : memref<1x256xf32, #tpu.memory_space<vmem>>, vector<1x256xf32>
      %22 = arith.mulf %11, %11 : vector<8x256xf32>
      %cst_16 = arith.constant dense<0.000000e+00> : vector<256xf32>
      %23 = vector.multi_reduction <add>, %22, %cst_16 [0] : vector<8x256xf32> to vector<256xf32>
      %24 = vector.shape_cast %23 : vector<256xf32> to vector<1x256xf32>
      %25 = arith.addf %21, %24 : vector<1x256xf32>
      %c0_17 = arith.constant 0 : index
      %c0_18 = arith.constant 0 : index
      %26 = vector.load %arg11[%c0_17, %c0_18] : memref<1x256xf32, #tpu.memory_space<vmem>>, vector<1x256xf32>
      tpu.vector_store %arg11[%c0_17, %c0_18], %25 {strides = array<i32>} : memref<1x256xf32, #tpu.memory_space<vmem>>, vector<1x256xf32>,
      %cst_19 = arith.constant 0.000000e+00 : f32
      %27 = vector.broadcast %cst_19 : f32 to vector<8x896xf32>
      %c0_20 = arith.constant 0 : index
      %c0_21 = arith.constant 0 : index
      %28 = vector.load %arg8[%c0_20, %c0_21] : memref<8x896xf32, #tpu.memory_space<vmem>>, vector<8x896xf32>
      tpu.vector_store %arg8[%c0_20, %c0_21], %27 {strides = array<i32>} : memref<8x896xf32, #tpu.memory_space<vmem>>, vector<8x896xf32>,
    } else {
    }
    %c1_i32 = arith.constant 1 : i32
    %3 = arith.cmpi eq, %arg0, %c1_i32 : i32
    %4 = arith.extui %3 : i1 to i32
    %c0_i32_1 = arith.constant 0 : i32
    %5 = arith.cmpi ne, %4, %c0_i32_1 : i32
    scf.if %5 {
      %6 = arith.index_cast %arg1 : i32 to index
      %c0 = arith.constant 0 : index
      %c0_2 = arith.constant 0 : index
      %7 = vector.load %arg9[%6, %c0, %c0_2] : memref<4x8x256xf32, #tpu.memory_space<vmem>>, vector<1x8x256xf32>
      %8 = vector.shape_cast %7 : vector<1x8x256xf32> to vector<8x256xf32>
      %c0_3 = arith.constant 0 : index
      %c0_4 = arith.constant 0 : index
      %9 = vector.load %arg10[%c0_3, %c0_4] : memref<1x256xf32, #tpu.memory_space<vmem>>, vector<1x256xf32>
      %cst = arith.constant 3.125000e-02 : f32
      %10 = vector.broadcast %cst : f32 to vector<1x256xf32>
      %11 = arith.mulf %9, %10 : vector<1x256xf32>
      %c0_5 = arith.constant 0 : index
      %c0_6 = arith.constant 0 : index
      %12 = vector.load %arg11[%c0_5, %c0_6] : memref<1x256xf32, #tpu.memory_space<vmem>>, vector<1x256xf32>
      %cst_7 = arith.constant 3.125000e-02 : f32
      %13 = vector.broadcast %cst_7 : f32 to vector<1x256xf32>
      %14 = arith.mulf %12, %13 : vector<1x256xf32>
      %15 = arith.mulf %11, %11 : vector<1x256xf32>
      %16 = arith.subf %14, %15 : vector<1x256xf32>
      %c0_8 = arith.constant 0 : index
      %c0_9 = arith.constant 0 : index
      %17 = vector.load %arg4[%c0_8, %c0_9] : memref<1x256xf32, #tpu.memory_space<vmem>>, vector<1x256xf32>
      %cst_10 = arith.constant 9.99999974E-6 : f32
      %18 = vector.broadcast %cst_10 : f32 to vector<1x256xf32>
      %19 = arith.addf %16, %18 : vector<1x256xf32>
      %20 = math.rsqrt %19 : vector<1x256xf32>
      %21 = arith.mulf %17, %20 : vector<1x256xf32>
      %c0_11 = arith.constant 0 : index
      %c0_12 = arith.constant 0 : index
      %22 = vector.load %arg5[%c0_11, %c0_12] : memref<1x256xf32, #tpu.memory_space<vmem>>, vector<1x256xf32>
      %23 = arith.mulf %11, %21 : vector<1x256xf32>
      %24 = arith.subf %22, %23 : vector<1x256xf32>
      %25 = vector.broadcast %21 : vector<1x256xf32> to vector<8x256xf32>
      %26 = arith.mulf %8, %25 : vector<8x256xf32>
      %27 = vector.broadcast %24 : vector<1x256xf32> to vector<8x256xf32>
      %28 = arith.addf %26, %27 : vector<8x256xf32>
      %cst_13 = arith.constant 0.000000e+00 : f32
      %29 = vector.broadcast %cst_13 : f32 to vector<8x256xf32>
      %30 = arith.maximumf %28, %29 : vector<8x256xf32>
      %31 = arith.truncf %30 : vector<8x256xf32> to vector<8x256xbf16>
      %c0_14 = arith.constant 0 : index
      %c0_15 = arith.constant 0 : index
      %32 = vector.load %arg6[%c0_14, %c0_15] : memref<256x896xbf16, #tpu.memory_space<vmem>>, vector<256x896xbf16>
      %cst_16 = arith.constant dense<0.000000e+00> : vector<8x896xf32>
      %33 = tpu.matmul %31, %32, %cst_16 {dimension_numbers = #tpu.dot_dimension_numbers<[1], [0], [0], [1], [0, 0, 1, 1], [], []>} : vector<8x256xbf16>, vector<256x896xbf16>, vector<8x896xf32> -> vector<8x896xf32>
      %c0_17 = arith.constant 0 : index
      %c0_18 = arith.constant 0 : index
      %34 = vector.load %arg7[%c0_17, %c0_18] : memref<1x896xf32, #tpu.memory_space<vmem>>, vector<1x896xf32>
      %35 = vector.broadcast %34 : vector<1x896xf32> to vector<8x896xf32>
      %36 = arith.addf %33, %35 : vector<8x896xf32>
      %cst_19 = arith.constant 0.000000e+00 : f32
      %37 = vector.broadcast %cst_19 : f32 to vector<8x896xf32>
      %38 = arith.subf %37, %36 : vector<8x896xf32>
      %39 = math.exp %38 : vector<8x896xf32>
      %cst_20 = arith.constant 1.000000e+00 : f32
      %40 = vector.broadcast %cst_20 : f32 to vector<8x896xf32>
      %41 = arith.addf %40, %39 : vector<8x896xf32>
      %42 = tpu.reciprocal %41 {approx = true} : vector<8x896xf32> -> vector<8x896xf32>
      %c0_21 = arith.constant 0 : index
      %c0_22 = arith.constant 0 : index
      %43 = vector.load %arg8[%c0_21, %c0_22] : memref<8x896xf32, #tpu.memory_space<vmem>>, vector<8x896xf32>
      tpu.vector_store %arg8[%c0_21, %c0_22], %42 {strides = array<i32>} : memref<8x896xf32, #tpu.memory_space<vmem>>, vector<8x896xf32>,
    } else {
    }
    return
  }
  func.func @transform_0(%arg0: i32, %arg1: i32) -> (i32, i32) {
    %c0_i32 = arith.constant 0 : i32
    %c0_i32_0 = arith.constant 0 : i32
    return %arg1, %c0_i32 : i32, i32
  }
  func.func @transform_1(%arg0: i32, %arg1: i32) -> (i32, i32) {
    %c0_i32 = arith.constant 0 : i32
    %c0_i32_0 = arith.constant 0 : i32
    %c0_i32_1 = arith.constant 0 : i32
    return %c0_i32, %c0_i32_0 : i32, i32
  }
  func.func @transform_2(%arg0: i32, %arg1: i32) -> (i32, i32) {
    %c0_i32 = arith.constant 0 : i32
    %c0_i32_0 = arith.constant 0 : i32
    %c0_i32_1 = arith.constant 0 : i32
    return %c0_i32, %c0_i32_0 : i32, i32
  }
  func.func @transform_3(%arg0: i32, %arg1: i32) -> (i32, i32) {
    %c0_i32 = arith.constant 0 : i32
    %c0_i32_0 = arith.constant 0 : i32
    %c0_i32_1 = arith.constant 0 : i32
    return %c0_i32, %c0_i32_0 : i32, i32
  }
  func.func @transform_4(%arg0: i32, %arg1: i32) -> (i32, i32) {
    %c0_i32 = arith.constant 0 : i32
    %c0_i32_0 = arith.constant 0 : i32
    %c0_i32_1 = arith.constant 0 : i32
    return %c0_i32, %c0_i32_0 : i32, i32
  }
  func.func @transform_5(%arg0: i32, %arg1: i32) -> (i32, i32) {
    %c0_i32 = arith.constant 0 : i32
    %c0_i32_0 = arith.constant 0 : i32
    %c0_i32_1 = arith.constant 0 : i32
    return %c0_i32, %c0_i32_0 : i32, i32
  }
  func.func @transform_6(%arg0: i32, %arg1: i32) -> (i32, i32) {
    %c0_i32 = arith.constant 0 : i32
    %c0_i32_0 = arith.constant 0 : i32
    return %arg1, %c0_i32 : i32, i32
  }
}

</mosaic_0001>

<llo_original>
// kernel: tpu_custom_call.1
$region0: #{tpu_custom_call.1}
  #allocation0 [shape = 'u32[]', space=smem, size = 0x4, offset = 0x4, fixed_abs, tag = 'smem constant byte address 0x4 - core index']
  #allocation1 [shape = 'u32[144,128]{1,0:T(1,128)}', space=vmem, size = 0x12000, scoped, tag = 'internal scratch']
  #allocation2 [shape = 'f32[4,8,256]{2,1,0:T(8,128)}', space=vmem, size = 0x8000, scoped, tag = 'scratch operand']
  #allocation3 [shape = 'f32[1,256]{1,0:T(1,128)}', space=vmem, size = 0x400, scoped, tag = 'scratch operand']
  #allocation4 [shape = 'f32[1,256]{1,0:T(1,128)}', space=vmem, size = 0x400, scoped, tag = 'scratch operand']
  %s0 = inlined_call_operand.hbm [shape: bf16[32,128], index: 0, kind: input, shape index: {}]
  %s1 = inlined_call_operand.hbm [shape: bf16[128,256], index: 1, kind: input, shape index: {}]
  %s2 = inlined_call_operand.vmem [shape: f32[1,256], index: 2, kind: input, shape index: {}]
  %s3 = inlined_call_operand.vmem [shape: f32[1,256], index: 3, kind: input, shape index: {}]
  %s4 = inlined_call_operand.hbm [shape: bf16[256,896], index: 4, kind: input, shape index: {}]
  %s5 = inlined_call_operand.vmem [shape: f32[1,896], index: 5, kind: input, shape index: {}]
  %s6 = inlined_call_operand.hbm [shape: f32[32,896], index: 6, kind: output, shape index: {}]
  %s7 = sld [smem:[#allocation0]]
  $region81: #{tpu_custom_call.1} parent=0
    _
  %s9 = ssub.s32 1, %s7
  %s10 = scalar_select 0, %s9, %s7
  $region1: #{tpu_custom_call.1} parent=0
    #allocation5 [shape = 'u8[4096]{0}', space=vmem, size = 0x1000, scoped, tag = 'input window, operand 0']
    #allocation6 [shape = 's32[2]{0}', space=sflag, size = 0x8, scoped, tag = 'scoped memory for tpu_custom_call.1']
    #allocation7 [shape = 's32[2]{0}', space=sflag, size = 0x8, scoped, tag = 'scoped memory for tpu_custom_call.1']
    #allocation8 [shape = 'u8[65536]{0}', space=vmem, size = 0x10000, scoped, tag = 'input window, operand 1, single buffered']
    #allocation9 [shape = 's32[1]{0}', space=sflag, size = 0x4, scoped, tag = 'scoped memory for tpu_custom_call.1']
    #allocation10 [shape = 'u8[458752]{0}', space=vmem, size = 0x70000, scoped, tag = 'input window, operand 4, single buffered']
    #allocation11 [shape = 'u8[57344]{0}', space=vmem, size = 0xe000, scoped, tag = 'output window, operand 0']
    %11 = vsyncpa [#allocation6], 0
    %s12 = scalar_lea.sflag [#allocation6], 1
    %13 = vsyncpa %s12, 0
    %14 = vsyncpa [#allocation9], 0
    %15 = vsyncpa [#allocation7], 0
    %s16 = scalar_lea.sflag [#allocation7], 1
    %17 = vsyncpa %s16, 0
    loop: start=0, step=1, limit=10
    $region2: #{tpu_custom_call.1} parent=1 // loop_pre_header
      _
    $region3: #{tpu_custom_call.1} parent=1 // loop_header
      %s19 = sphi 0, %s23
      %p20 = scmp.ge.s32.totalorder %s19, 10
      %s26 = sphi 0, %s38
      %s27 = sphi 0, %s34
      %s28 = sphi 0, %s26
      %s29 = sphi 0, %s27
      %s30 = sphi 0, %s28
      %s31 = sphi 0, %s29
      %s41 = sphi 0, %s43
      %s44 = sphi 0, %s41
      %s45 = sphi 0, %s44
      %s61 = sphi 0, %s45
      %s65 = sphi 0, %s65
      %s67 = sphi 0, %s65
      %s68 = sphi 0, %s67
      %s82 = sphi 0, %s68
      %s86 = sphi 0, %s86
      %s88 = sphi 0, %s86
      %s89 = sphi 0, %s88
      %s103 = sphi 0, %s89
      %s107 = sphi 0, %s107
      %s109 = sphi 0, %s107
      %s110 = sphi 0, %s109
      %s124 = sphi 0, %s110
      %s128 = sphi 0, %s128
      %s130 = sphi 0, %s128
      %s131 = sphi 0, %s130
      %s145 = sphi 0, %s131
      %s149 = sphi 0, %s149
      %s151 = sphi 0, %s149
      %s152 = sphi 0, %s151
      %s166 = sphi 0, %s152
      %s172 = sphi 0, %s174
      %s175 = sphi 0, %s172
      %s176 = sphi 0, %s175
      %s192 = sphi 0, %s176
    $region4: #{tpu_custom_call.1} parent=1 // loop_header_branch
      %22 = sbr.rel (%p20) target = $region8
    $region5: #{tpu_custom_call.1} parent=1 // loop_body
      %s24 = ssub.s32 %s19, 1
      %s25 = ssub.s32 %s19, 2
      %s32 = sadd.s32 1, %s27
      %p33 = scmp.ge.s32.totalorder %s32, 4
      %s34 = scalar_select %p33, 0, %s32
      %s35 = sadd.s32 1, %s26
      %s36 = scalar_select %p33, %s35, %s26
      %p37 = scmp.ge.s32.totalorder %s36, 2
      %s38 = scalar_select %p37, 0, %s36
      %s39 = ssub.s32 %s27, %s34
      %p40 = scmp.eq.s32.totalorder %s39, 0
      %s42 = sadd.s32 %s41, 1
      %s43 = scalar_select %p40, %s41, %s42
      %p46 = pneg %p40
      %p47 = scmp.eq.s32.totalorder %s19, 7
      %p48 = por %p46, %p47
      %p49 = scmp.ne.s32.totalorder %s41, %s44
      %p50 = scmp.eq.s32.totalorder %s19, 0
      %p51 = por %p49, %p50
      %p52 = scmp.ne.s32.totalorder %s41, %s44
      %p53 = scmp.eq.s32.totalorder %s24, 7
      %p54 = por %p52, %p53
      %p55 = scmp.ne.s32.totalorder %s44, %s45
      %p56 = scmp.eq.s32.totalorder %s24, 0
      %p57 = por %p55, %p56
      %p58 = scmp.ne.s32.totalorder %s44, %s45
      %p59 = scmp.eq.s32.totalorder %s25, 7
      %p60 = por %p58, %p59
      %p62 = scmp.ne.s32.totalorder %s45, %s61
      %p63 = scmp.eq.s32.totalorder %s25, 0
      %p64 = por %p62, %p63
      %s66 = sadd.s32 %s65, 1
      %p69 = scmp.eq.s32.totalorder %s19, 7
      %p70 = scmp.ne.s32.totalorder %s65, %s67
      %p71 = scmp.eq.s32.totalorder %s19, 0
      %p72 = por %p70, %p71
      %p73 = scmp.ne.s32.totalorder %s65, %s67
      %p74 = scmp.eq.s32.totalorder %s24, 7
      %p75 = por %p73, %p74
      %p76 = scmp.ne.s32.totalorder %s67, %s68
      %p77 = scmp.eq.s32.totalorder %s24, 0
      %p78 = por %p76, %p77
      %p79 = scmp.ne.s32.totalorder %s67, %s68
      %p80 = scmp.eq.s32.totalorder %s25, 7
      %p81 = por %p79, %p80
      %p83 = scmp.ne.s32.totalorder %s68, %s82
      %p84 = scmp.eq.s32.totalorder %s25, 0
      %p85 = por %p83, %p84
      %s87 = sadd.s32 %s86, 1
      %p90 = scmp.eq.s32.totalorder %s19, 7
      %p91 = scmp.ne.s32.totalorder %s86, %s88
      %p92 = scmp.eq.s32.totalorder %s19, 0
      %p93 = por %p91, %p92
      %p94 = scmp.ne.s32.totalorder %s86, %s88
      %p95 = scmp.eq.s32.totalorder %s24, 7
      %p96 = por %p94, %p95
      %p97 = scmp.ne.s32.totalorder %s88, %s89
      %p98 = scmp.eq.s32.totalorder %s24, 0
      %p99 = por %p97, %p98
      %p100 = scmp.ne.s32.totalorder %s88, %s89
      %p101 = scmp.eq.s32.totalorder %s25, 7
      %p102 = por %p100, %p101
      %p104 = scmp.ne.s32.totalorder %s89, %s103
      %p105 = scmp.eq.s32.totalorder %s25, 0
      %p106 = por %p104, %p105
      %s108 = sadd.s32 %s107, 1
      %p111 = scmp.eq.s32.totalorder %s19, 7
      %p112 = scmp.ne.s32.totalorder %s107, %s109
      %p113 = scmp.eq.s32.totalorder %s19, 0
      %p114 = por %p112, %p113
      %p115 = scmp.ne.s32.totalorder %s107, %s109
      %p116 = scmp.eq.s32.totalorder %s24, 7
      %p117 = por %p115, %p116
      %p118 = scmp.ne.s32.totalorder %s109, %s110
      %p119 = scmp.eq.s32.totalorder %s24, 0
      %p120 = por %p118, %p119
      %p121 = scmp.ne.s32.totalorder %s109, %s110
      %p122 = scmp.eq.s32.totalorder %s25, 7
      %p123 = por %p121, %p122
      %p125 = scmp.ne.s32.totalorder %s110, %s124
      %p126 = scmp.eq.s32.totalorder %s25, 0
      %p127 = por %p125, %p126
      %s129 = sadd.s32 %s128, 1
      %p132 = scmp.eq.s32.totalorder %s19, 7
      %p133 = scmp.ne.s32.totalorder %s128, %s130
      %p134 = scmp.eq.s32.totalorder %s19, 0
      %p135 = por %p133, %p134
      %p136 = scmp.ne.s32.totalorder %s128, %s130
      %p137 = scmp.eq.s32.totalorder %s24, 7
      %p138 = por %p136, %p137
      %p139 = scmp.ne.s32.totalorder %s130, %s131
      %p140 = scmp.eq.s32.totalorder %s24, 0
      %p141 = por %p139, %p140
      %p142 = scmp.ne.s32.totalorder %s130, %s131
      %p143 = scmp.eq.s32.totalorder %s25, 7
      %p144 = por %p142, %p143
      %p146 = scmp.ne.s32.totalorder %s131, %s145
      %p147 = scmp.eq.s32.totalorder %s25, 0
      %p148 = por %p146, %p147
      %s150 = sadd.s32 %s149, 1
      %p153 = scmp.eq.s32.totalorder %s19, 7
      %p154 = scmp.ne.s32.totalorder %s149, %s151
      %p155 = scmp.eq.s32.totalorder %s19, 0
      %p156 = por %p154, %p155
      %p157 = scmp.ne.s32.totalorder %s149, %s151
      %p158 = scmp.eq.s32.totalorder %s24, 7
      %p159 = por %p157, %p158
      %p160 = scmp.ne.s32.totalorder %s151, %s152
      %p161 = scmp.eq.s32.totalorder %s24, 0
      %p162 = por %p160, %p161
      %p163 = scmp.ne.s32.totalorder %s151, %s152
      %p164 = scmp.eq.s32.totalorder %s25, 7
      %p165 = por %p163, %p164
      %p167 = scmp.ne.s32.totalorder %s152, %s166
      %p168 = scmp.eq.s32.totalorder %s25, 0
      %p169 = por %p167, %p168
      %s170 = ssub.s32 %s27, %s34
      %p171 = scmp.eq.s32.totalorder %s170, 0
      %s173 = sadd.s32 %s172, 1
      %s174 = scalar_select %p171, %s172, %s173
      %p177 = pneg %p171
      %p178 = scmp.eq.s32.totalorder %s19, 7
      %p179 = por %p177, %p178
      %p180 = scmp.ne.s32.totalorder %s172, %s175
      %p181 = scmp.eq.s32.totalorder %s19, 0
      %p182 = por %p180, %p181
      %p183 = scmp.ne.s32.totalorder %s172, %s175
      %p184 = scmp.eq.s32.totalorder %s24, 7
      %p185 = por %p183, %p184
      %p186 = scmp.ne.s32.totalorder %s175, %s176
      %p187 = scmp.eq.s32.totalorder %s24, 0
      %p188 = por %p186, %p187
      %p189 = scmp.ne.s32.totalorder %s175, %s176
      %p190 = scmp.eq.s32.totalorder %s25, 7
      %p191 = por %p189, %p190
      %p193 = scmp.ne.s32.totalorder %s176, %s192
      %p194 = scmp.eq.s32.totalorder %s25, 0
      %p195 = por %p193, %p194
      %p196 = scmp.le.s32.totalorder 1, %s19
      %p197 = scmp.lt.s32.totalorder %s19, 9
      %p198 = pnand %p196, %p197
      %p199 = pneg %p198
      // Predicated region
      $region9: #{tpu_custom_call.1} parent=5 // pred_check
        _
      $region10: #{tpu_custom_call.1} parent=5 // pred_check_branch
        %201 = sbr.rel (%p198) target = $region12
      $region11: #{tpu_custom_call.1} parent=5 // pred_region
        %s202 = ssub.s32 %s19, 1
        // Predicated region
        $region13: #{tpu_custom_call.1} parent=11 // pred_check
          %p203 = pneg %p78
        $region14: #{tpu_custom_call.1} parent=11 // pred_check_branch
          %205 = sbr.rel (%p203) target = $region16
        $region15: #{tpu_custom_call.1} parent=11 // pred_region
          %s207 = ssub.s32 2048, 2048
          %208 = vsyncadd [#allocation9], %s207
          %s209 = sshll.u32 [#allocation8], 4
          %s210 = int_to_ptr.vmem [resolvable:$true] %s209
          %215 = dma.hbm_to_vmem [thread:$0]  %s1, 2048, %s210, [#allocation9], 128, 128, 8
        $region16: #{tpu_custom_call.1} parent=11 // pred_fallthru
          _
        // Predicated region
        $region17: #{tpu_custom_call.1} parent=11 // pred_check
          %p216 = pneg %p99
        $region18: #{tpu_custom_call.1} parent=11 // pred_check_branch
          %218 = sbr.rel (%p216) target = $region20
        $region19: #{tpu_custom_call.1} parent=11 // pred_region
          _
        $region20: #{tpu_custom_call.1} parent=11 // pred_fallthru
          _
        // Predicated region
        $region21: #{tpu_custom_call.1} parent=11 // pred_check
          %p219 = pneg %p120
        $region22: #{tpu_custom_call.1} parent=11 // pred_check_branch
          %221 = sbr.rel (%p219) target = $region24
        $region23: #{tpu_custom_call.1} parent=11 // pred_region
          _
        $region24: #{tpu_custom_call.1} parent=11 // pred_fallthru
          _
        // Predicated region
        $region25: #{tpu_custom_call.1} parent=11 // pred_check
          %p222 = pneg %p141
        $region26: #{tpu_custom_call.1} parent=11 // pred_check_branch
          %224 = sbr.rel (%p222) target = $region28
        $region27: #{tpu_custom_call.1} parent=11 // pred_region
          %s226 = ssub.s32 14336, 14336
          %227 = vsyncadd [#allocation9], %s226
          %s228 = sshll.u32 [#allocation10], 4
          %s229 = int_to_ptr.vmem [resolvable:$true] %s228
          %234 = dma.hbm_to_vmem [thread:$0]  %s4, 14336, %s229, [#allocation9], 448, 448, 28
        $region28: #{tpu_custom_call.1} parent=11 // pred_fallthru
          _
        // Predicated region
        $region29: #{tpu_custom_call.1} parent=11 // pred_check
          %p235 = pneg %p162
        $region30: #{tpu_custom_call.1} parent=11 // pred_check_branch
          %237 = sbr.rel (%p235) target = $region32
        $region31: #{tpu_custom_call.1} parent=11 // pred_region
          _
        $region32: #{tpu_custom_call.1} parent=11 // pred_fallthru
          _
      $region12: #{tpu_custom_call.1} parent=5 // pred_fallthru
        _
      %p238 = scmp.lt.s32.totalorder %s19, 8
      // Predicated region
      $region33: #{tpu_custom_call.1} parent=5 // pred_check
        %p239 = pneg %p238
      $region34: #{tpu_custom_call.1} parent=5 // pred_check_branch
        %241 = sbr.rel (%p239) target = $region36
      $region35: #{tpu_custom_call.1} parent=5 // pred_region
        // Predicated region
        $region37: #{tpu_custom_call.1} parent=35 // pred_check
          %p242 = pneg %p51
        $region38: #{tpu_custom_call.1} parent=35 // pred_check_branch
          %244 = sbr.rel (%p242) target = $region40
        $region39: #{tpu_custom_call.1} parent=35 // pred_region
          %s245 = sand.u32 %s41, 1
          %s246 = scalar_lea.sflag [#allocation6], %s245
          %s247 = sand.u32 %s41, 1
          %s248 = smul.addr %s247, 4
          %s249 = scalar_lea.vmem [#allocation5], %s248
          %s251 = ssub.s32 64, 64
          %252 = vsyncadd %s246, %s251
          %s253 = smul.addr %s27, 64
          %s254 = scalar_lea.hbm %s0, %s253
          %s256 = sshll.u32 %s249, 4
          %s257 = int_to_ptr.vmem [resolvable:$true] %s256
          %259 = dma.hbm_to_vmem [thread:$0]  %s254, 64, %s257, %s246
        $region40: #{tpu_custom_call.1} parent=35 // pred_fallthru
          _
      $region36: #{tpu_custom_call.1} parent=5 // pred_fallthru
        _
      %p260 = scmp.le.s32.totalorder 1, %s19
      %p261 = scmp.lt.s32.totalorder %s19, 9
      %p262 = pnand %p260, %p261
      %p263 = pneg %p262
      // Predicated region
      $region41: #{tpu_custom_call.1} parent=5 // pred_check
        _
      $region42: #{tpu_custom_call.1} parent=5 // pred_check_branch
        %265 = sbr.rel (%p262) target = $region44
      $region43: #{tpu_custom_call.1} parent=5 // pred_region
        %s266 = ssub.s32 %s19, 1
        %s267 = sand.u32 %s44, 1
        %s268 = scalar_lea.sflag [#allocation6], %s267
        %s269 = sand.u32 %s44, 1
        %s270 = smul.addr %s269, 4
        %s271 = scalar_lea.vmem [#allocation5], %s270
        // Predicated region
        $region45: #{tpu_custom_call.1} parent=43 // pred_check
          %p272 = pneg %p57
        $region46: #{tpu_custom_call.1} parent=43 // pred_check_branch
          %274 = sbr.rel (%p272) target = $region48
        $region47: #{tpu_custom_call.1} parent=43 // pred_region
          %275 = dma.done %s268, 64
        $region48: #{tpu_custom_call.1} parent=43 // pred_fallthru
          _
        // Predicated region
        $region49: #{tpu_custom_call.1} parent=43 // pred_check
          %p276 = pneg %p78
        $region50: #{tpu_custom_call.1} parent=43 // pred_check_branch
          %278 = sbr.rel (%p276) target = $region52
        $region51: #{tpu_custom_call.1} parent=43 // pred_region
          %279 = dma.done [#allocation9], 2048
        $region52: #{tpu_custom_call.1} parent=43 // pred_fallthru
          _
        // Predicated region
        $region53: #{tpu_custom_call.1} parent=43 // pred_check
          %p280 = pneg %p141
        $region54: #{tpu_custom_call.1} parent=43 // pred_check_branch
          %282 = sbr.rel (%p280) target = $region56
        $region55: #{tpu_custom_call.1} parent=43 // pred_region
          %283 = dma.done [#allocation9], 14336
        $region56: #{tpu_custom_call.1} parent=43 // pred_fallthru
          _
        %s284 = sand.u32 %s44, 1
        %s285 = scalar_lea.sflag [#allocation6], %s284
        %s286 = sand.u32 %s44, 1
        %s287 = smul.addr %s286, 4
        %s288 = scalar_lea.vmem [#allocation5], %s287
        %p289 = pneg %p57
        %p290 = pneg %p54
        %p291 = pneg %p78
        %p292 = pneg %p75
        %p293 = pneg %p99
        %p294 = pneg %p96
        %p295 = pneg %p120
        %p296 = pneg %p117
        %p297 = pneg %p141
        %p298 = pneg %p138
        %p299 = pneg %p162
        %p300 = pneg %p159
        %p301 = pneg %p188
        %p302 = pneg %p185
        %s303 = sand.u32 %s175, 1
        %s304 = scalar_lea.sflag [#allocation7], %s303
        %s305 = sand.u32 %s175, 1
        %s306 = smul.addr %s305, 56
        %s307 = scalar_lea.vmem [#allocation11], %s306
        %p309 = scmp.eq.s32.totalorder %s28, 0
        // Predicated region
        $region57: #{tpu_custom_call.1} parent=43 // pred_check
          %p310 = pneg %p309
        $region58: #{tpu_custom_call.1} parent=43 // pred_check_branch
          %312 = sbr.rel (%p310) target = $region60
        $region59: #{tpu_custom_call.1} parent=43 // pred_region
          %p313 = scmp.eq.s32.totalorder %s29, 0
          // Predicated region
          $region61: #{tpu_custom_call.1} parent=59 // pred_check
            %p314 = pneg %p313
          $region62: #{tpu_custom_call.1} parent=59 // pred_check_branch
            %316 = sbr.rel (%p314) target = $region64
          $region63: #{tpu_custom_call.1} parent=59 // pred_region
            %v317 = vlaneseq
            %vm318 = vcmp.ge.s32.totalorder %v317, 0
            %vm319 = vcmp.lt.s32.totalorder %v317, 256
            %vm320 = vmand %vm318, %vm319
            %321 = vst.msk [vmem:[#allocation3] sm:$0x3] %vm320, 0.0
            %322 = vst.msk [vmem:[#allocation4] sm:$0x3] %vm320, 0.0
          $region64: #{tpu_custom_call.1} parent=59 // pred_fallthru
            _
          %v323 = vld [vmem:[%s271] sm:$0xf]
          %v324 = vld [vmem:[#allocation8] sm:$0xff]
          %v325 = vld [vmem:[#allocation8 + $0x8] sm:$0xff]
          %v326 = vld [vmem:[#allocation8 + $0x10] sm:$0xff]
          %v327 = vld [vmem:[#allocation8 + $0x18] sm:$0xff]
          %v328 = vld [vmem:[#allocation8 + $0x20] sm:$0xff]
          %v329 = vld [vmem:[#allocation8 + $0x28] sm:$0xff]
          %v330 = vld [vmem:[#allocation8 + $0x30] sm:$0xff]
          %v331 = vld [vmem:[#allocation8 + $0x38] sm:$0xff]
          %v332 = vld [vmem:[#allocation8 + $0x40] sm:$0xff]
          %v333 = vld [vmem:[#allocation8 + $0x48] sm:$0xff]
          %v334 = vld [vmem:[#allocation8 + $0x50] sm:$0xff]
          %v335 = vld [vmem:[#allocation8 + $0x58] sm:$0xff]
          %v336 = vld [vmem:[#allocation8 + $0x60] sm:$0xff]
          %v337 = vld [vmem:[#allocation8 + $0x68] sm:$0xff]
          %v338 = vld [vmem:[#allocation8 + $0x70] sm:$0xff]
          %v339 = vld [vmem:[#allocation8 + $0x78] sm:$0xff]
          %v356 = vunpack.c.l.b16 %v324
          %v357 = vunpack.c.h.b16 %v324
          %v358 = vunpack.c.l.b16 %v325
          %v359 = vunpack.c.h.b16 %v325
          %v360 = vunpack.c.l.b16 %v326
          %v361 = vunpack.c.h.b16 %v326
          %v362 = vunpack.c.l.b16 %v327
          %v363 = vunpack.c.h.b16 %v327
          %v364 = vunpack.c.l.b16 %v328
          %v365 = vunpack.c.h.b16 %v328
          %v366 = vunpack.c.l.b16 %v329
          %v367 = vunpack.c.h.b16 %v329
          %v368 = vunpack.c.l.b16 %v330
          %v369 = vunpack.c.h.b16 %v330
          %v370 = vunpack.c.l.b16 %v331
          %v371 = vunpack.c.h.b16 %v331
          %v372 = vunpack.c.l.b16 %v332
          %v373 = vunpack.c.h.b16 %v332
          %v374 = vunpack.c.l.b16 %v333
          %v375 = vunpack.c.h.b16 %v333
          %v376 = vunpack.c.l.b16 %v334
          %v377 = vunpack.c.h.b16 %v334
          %v378 = vunpack.c.l.b16 %v335
          %v379 = vunpack.c.h.b16 %v335
          %v380 = vunpack.c.l.b16 %v336
          %v381 = vunpack.c.h.b16 %v336
          %v382 = vunpack.c.l.b16 %v337
          %v383 = vunpack.c.h.b16 %v337
          %v384 = vunpack.c.l.b16 %v338
          %v385 = vunpack.c.h.b16 %v338
          %v386 = vunpack.c.l.b16 %v339
          %v387 = vunpack.c.h.b16 %v339
          %v388 = vpack.c.b16 %v358, %v356
          %v389 = vpack.c.b16 %v359, %v357
          %v390 = vpack.c.b16 %v362, %v360
          %v391 = vpack.c.b16 %v363, %v361
          %v392 = vpack.c.b16 %v366, %v364
          %v393 = vpack.c.b16 %v367, %v365
          %v394 = vpack.c.b16 %v370, %v368
          %v395 = vpack.c.b16 %v371, %v369
          %v396 = vpack.c.b16 %v374, %v372
          %v397 = vpack.c.b16 %v375, %v373
          %v398 = vpack.c.b16 %v378, %v376
          %v399 = vpack.c.b16 %v379, %v377
          %v400 = vpack.c.b16 %v382, %v380
          %v401 = vpack.c.b16 %v383, %v381
          %v402 = vpack.c.b16 %v386, %v384
          %v403 = vpack.c.b16 %v387, %v385
          %420 = vmatprep.subr.bf16.mxu0 %v389
          %421 = vmatpush1.bf16.msra.mxu0 %v388
          %422 = vmatprep.subr.bf16.mxu0 %v391
          %423 = vmatpush1.bf16.msra.mxu0 %v390
          %424 = vmatprep.subr.bf16.mxu0 %v393
          %425 = vmatpush1.bf16.msra.mxu0 %v392
          %426 = vmatprep.subr.bf16.mxu0 %v395
          %427 = vmatpush1.bf16.msra.mxu0 %v394
          %428 = vmatprep.subr.bf16.mxu0 %v397
          %429 = vmatpush1.bf16.msra.mxu0 %v396
          %430 = vmatprep.subr.bf16.mxu0 %v399
          %431 = vmatpush1.bf16.msra.mxu0 %v398
          %432 = vmatprep.subr.bf16.mxu0 %v401
          %433 = vmatpush1.bf16.msra.mxu0 %v400
          %434 = vmatprep.subr.bf16.mxu0 %v403
          %435 = vmatpush1.bf16.msra.mxu0 %v402
          %436 = vmatprep.subr.bf16.mxu0 0
          %437 = vmatpush1.bf16.msra.mxu0 0
          %438 = vmatprep.subr.bf16.mxu0 0
          %439 = vmatpush1.bf16.msra.mxu0 0
          %440 = vmatprep.subr.bf16.mxu0 0
          %441 = vmatpush1.bf16.msra.mxu0 0
          %442 = vmatprep.subr.bf16.mxu0 0
          %443 = vmatpush1.bf16.msra.mxu0 0
          %444 = vmatprep.subr.bf16.mxu0 0
          %445 = vmatpush1.bf16.msra.mxu0 0
          %446 = vmatprep.subr.bf16.mxu0 0
          %447 = vmatpush1.bf16.msra.mxu0 0
          %448 = vmatprep.subr.bf16.mxu0 0
          %449 = vmatpush1.bf16.msra.mxu0 0
          %450 = vmatprep.subr.bf16.mxu0 0
          %451 = vmatpush1.bf16.msra.mxu0 0
          %452 = vmatprep.mubr.bf16.mxu0 0
          %453 = vmatmul.mubr.bf16.gmra.mrb[0].mxu0 %v323
          %v454 = vpop.f32.mrb[0].mxu0
          %v455 = vadd.f32 0.0, %v454
          %v456 = vpop.f32.mrb[0].mxu0
          %v457 = vadd.f32 0.0, %v456
          %v458 = vpop.f32.mrb[0].mxu0
          %v459 = vpop.f32.mrb[0].mxu0
          %460 = vdwg.mxu0
          %s461 = smul.u32 %s29, 2
          %s462 = smul.addr %s461, 8
          %s463 = scalar_lea.vmem [#allocation2], %s462
          %464 = vst [vmem:[%s463] sm:$0xff] %v455
          %465 = vst [vmem:[%s463 + $0x8] sm:$0xff] %v457
          %v466 = vld [vmem:[#allocation3] sm:$0x3]
          %v467 = vrot.slane %v455, 4
          %v468 = vadd.f32 %v455, %v467
          %v469 = vrot.slane %v468, 2
          %v470 = vadd.f32 %v468, %v469
          %v471 = vrot.slane %v470, 1
          %v472 = vadd.f32 %v470, %v471
          %v473 = vrot.slane %v457, 4
          %v474 = vadd.f32 %v457, %v473
          %v475 = vrot.slane %v474, 2
          %v476 = vadd.f32 %v474, %v475
          %v477 = vrot.slane %v476, 1
          %v478 = vadd.f32 %v476, %v477
          %v481 = vcombine.low %v472, %v478
          %v483 = vunpack.c.l.s4 1966171168
          %v484 = vunpack.c.0.s8 %v483
          %v485 = vlaneseq
          %v486 = vshrl.u32 %v485, 7
          %v487 = vsub.s32 %v484, %v486
          %v488 = vrot.slane %v481, %v487
          %v490 = vunpack.c.l.s4 1966171168
          %v491 = vunpack.c.0.s8 %v490
          %v492 = vlaneseq
          %v493 = vshrl.u32 %v492, 7
          %v494 = vsub.s32 %v491, %v493
          %v495 = vrot.slane %v488, %v494
          %v497 = vadd.f32 %v466, %v495
          %v498 = vlaneseq
          %vm499 = vcmp.ge.s32.totalorder %v498, 0
          %vm500 = vcmp.lt.s32.totalorder %v498, 256
          %vm501 = vmand %vm499, %vm500
          %502 = vst.msk [vmem:[#allocation3] sm:$0x3] %vm501, %v497
          %v503 = vld [vmem:[#allocation4] sm:$0x3]
          %v504 = vmul.f32 %v455, %v455
          %v505 = vmul.f32 %v457, %v457
          %v506 = vrot.slane %v504, 4
          %v507 = vadd.f32 %v504, %v506
          %v508 = vrot.slane %v507, 2
          %v509 = vadd.f32 %v507, %v508
          %v510 = vrot.slane %v509, 1
          %v511 = vadd.f32 %v509, %v510
          %v512 = vrot.slane %v505, 4
          %v513 = vadd.f32 %v505, %v512
          %v514 = vrot.slane %v513, 2
          %v515 = vadd.f32 %v513, %v514
          %v516 = vrot.slane %v515, 1
          %v517 = vadd.f32 %v515, %v516
          %v520 = vcombine.low %v511, %v517
          %v522 = vunpack.c.l.s4 1966171168
          %v523 = vunpack.c.0.s8 %v522
          %v524 = vlaneseq
          %v525 = vshrl.u32 %v524, 7
          %v526 = vsub.s32 %v523, %v525
          %v527 = vrot.slane %v520, %v526
          %v529 = vunpack.c.l.s4 1966171168
          %v530 = vunpack.c.0.s8 %v529
          %v531 = vlaneseq
          %v532 = vshrl.u32 %v531, 7
          %v533 = vsub.s32 %v530, %v532
          %v534 = vrot.slane %v527, %v533
          %v536 = vadd.f32 %v503, %v534
          %537 = vst.msk [vmem:[#allocation4] sm:$0x3] %vm501, %v536
          %538 = vst [vmem:[%s307] sm:$0xff] 0.0
          %539 = vst [vmem:[%s307 + $0x8] sm:$0xff] 0.0
          %540 = vst [vmem:[%s307 + $0x10] sm:$0xff] 0.0
          %541 = vst [vmem:[%s307 + $0x18] sm:$0xff] 0.0
          %542 = vst [vmem:[%s307 + $0x20] sm:$0xff] 0.0
          %543 = vst [vmem:[%s307 + $0x28] sm:$0xff] 0.0
          %544 = vst [vmem:[%s307 + $0x30] sm:$0xff] 0.0
        $region60: #{tpu_custom_call.1} parent=43 // pred_fallthru
          _
        %p545 = scmp.eq.s32.totalorder %s28, 1
        // Predicated region
        $region65: #{tpu_custom_call.1} parent=43 // pred_check
          %p546 = pneg %p545
        $region66: #{tpu_custom_call.1} parent=43 // pred_check_branch
          %548 = sbr.rel (%p546) target = $region68
        $region67: #{tpu_custom_call.1} parent=43 // pred_region
          %s549 = smul.u32 %s29, 2
          %s550 = smul.addr %s549, 8
          %s551 = scalar_lea.vmem [#allocation2], %s550
          %v552 = vld [vmem:[%s551] sm:$0xff]
          %v553 = vld [vmem:[%s551 + $0x8] sm:$0xff]
          %v554 = vld [vmem:[#allocation3] sm:$0x3]
          %v555 = vmul.f32 %v554, 0.03125
          %v556 = vld [vmem:[#allocation4] sm:$0x3]
          %v557 = vmul.f32 %v556, 0.03125
          %v558 = vmul.f32 %v555, %v555
          %v559 = vsub.f32 %v557, %v558
          %v560 = vld [vmem:[%s2] sm:$0x3]
          %v561 = vadd.f32 %v559, 1e-05
          %v562 = vrsqrt.pop %v561
          %v563 = vmul.f32 %v560, %v562
          %v564 = vld [vmem:[%s3] sm:$0x3]
          %v565 = vmul.f32 %v555, %v563
          %v566 = vsub.f32 %v564, %v565
          %v568 = vlaneseq
          %v569 = vshrl.u32 %v568, 7
          %v570 = vsub.s32 0, %v569
          %v571 = vrot.slane %v563, %v570
          %v572 = vlaneseq
          %v573 = vshrl.u32 %v572, 7
          %v574 = vsub.s32 1, %v573
          %v575 = vrot.slane %v563, %v574
          %v578 = vmul.f32 %v552, %v571
          %v579 = vmul.f32 %v553, %v575
          %v581 = vlaneseq
          %v582 = vshrl.u32 %v581, 7
          %v583 = vsub.s32 0, %v582
          %v584 = vrot.slane %v566, %v583
          %v585 = vlaneseq
          %v586 = vshrl.u32 %v585, 7
          %v587 = vsub.s32 1, %v586
          %v588 = vrot.slane %v566, %v587
          %v591 = vadd.f32 %v578, %v584
          %v592 = vadd.f32 %v579, %v588
          %v593 = vmax.f32 %v591, 0.0
          %v594 = vmax.f32 %v592, 0.0
          %v595 = vpack.c.bf16 %v593, %v593
          %v596 = vpack.c.bf16 %v594, %v594
          %v597 = vld [vmem:[#allocation10] sm:$0xff]
          %v598 = vld [vmem:[#allocation10 + $0x8] sm:$0xff]
          %v599 = vld [vmem:[#allocation10 + $0x10] sm:$0xff]
          %v600 = vld [vmem:[#allocation10 + $0x18] sm:$0xf]
          %v601 = vld [vmem:[#allocation10 + $0x1c] sm:$0xff]
          %v602 = vld [vmem:[#allocation10 + $0x24] sm:$0xff]
          %v603 = vld [vmem:[#allocation10 + $0x2c] sm:$0xff]
          %v604 = vld [vmem:[#allocation10 + $0x34] sm:$0xf]
          %v605 = vld [vmem:[#allocation10 + $0x38] sm:$0xff]
          %v606 = vld [vmem:[#allocation10 + $0x40] sm:$0xff]
          %v607 = vld [vmem:[#allocation10 + $0x48] sm:$0xff]
          %v608 = vld [vmem:[#allocation10 + $0x50] sm:$0xf]
          %v609 = vld [vmem:[#allocation10 + $0x54] sm:$0xff]
          %v610 = vld [vmem:[#allocation10 + $0x5c] sm:$0xff]
          %v611 = vld [vmem:[#allocation10 + $0x64] sm:$0xff]
          %v612 = vld [vmem:[#allocation10 + $0x6c] sm:$0xf]
          %v613 = vld [vmem:[#allocation10 + $0x70] sm:$0xff]
          %v614 = vld [vmem:[#allocation10 + $0x78] sm:$0xff]
          %v615 = vld [vmem:[#allocation10 + $0x80] sm:$0xff]
          %v616 = vld [vmem:[#allocation10 + $0x88] sm:$0xf]
          %v617 = vld [vmem:[#allocation10 + $0x8c] sm:$0xff]
          %v618 = vld [vmem:[#allocation10 + $0x94] sm:$0xff]
          %v619 = vld [vmem:[#allocation10 + $0x9c] sm:$0xff]
          %v620 = vld [vmem:[#allocation10 + $0xa4] sm:$0xf]
          %v621 = vld [vmem:[#allocation10 + $0xa8] sm:$0xff]
          %v622 = vld [vmem:[#allocation10 + $0xb0] sm:$0xff]
          %v623 = vld [vmem:[#allocation10 + $0xb8] sm:$0xff]
          %v624 = vld [vmem:[#allocation10 + $0xc0] sm:$0xf]
          %v625 = vld [vmem:[#allocation10 + $0xc4] sm:$0xff]
          %v626 = vld [vmem:[#allocation10 + $0xcc] sm:$0xff]
          %v627 = vld [vmem:[#allocation10 + $0xd4] sm:$0xff]
          %v628 = vld [vmem:[#allocation10 + $0xdc] sm:$0xf]
          %v629 = vld [vmem:[#allocation10 + $0xe0] sm:$0xff]
          %v630 = vld [vmem:[#allocation10 + $0xe8] sm:$0xff]
          %v631 = vld [vmem:[#allocation10 + $0xf0] sm:$0xff]
          %v632 = vld [vmem:[#allocation10 + $0xf8] sm:$0xf]
          %v633 = vld [vmem:[#allocation10 + $0xfc] sm:$0xff]
          %v634 = vld [vmem:[#allocation10 + $0x104] sm:$0xff]
          %v635 = vld [vmem:[#allocation10 + $0x10c] sm:$0xff]
          %v636 = vld [vmem:[#allocation10 + $0x114] sm:$0xf]
          %v637 = vld [vmem:[#allocation10 + $0x118] sm:$0xff]
          %v638 = vld [vmem:[#allocation10 + $0x120] sm:$0xff]
          %v639 = vld [vmem:[#allocation10 + $0x128] sm:$0xff]
          %v640 = vld [vmem:[#allocation10 + $0x130] sm:$0xf]
          %v641 = vld [vmem:[#allocation10 + $0x134] sm:$0xff]
          %v642 = vld [vmem:[#allocation10 + $0x13c] sm:$0xff]
          %v643 = vld [vmem:[#allocation10 + $0x144] sm:$0xff]
          %v644 = vld [vmem:[#allocation10 + $0x14c] sm:$0xf]
          %v645 = vld [vmem:[#allocation10 + $0x150] sm:$0xff]
          %v646 = vld [vmem:[#allocation10 + $0x158] sm:$0xff]
          %v647 = vld [vmem:[#allocation10 + $0x160] sm:$0xff]
          %v648 = vld [vmem:[#allocation10 + $0x168] sm:$0xf]
          %v649 = vld [vmem:[#allocation10 + $0x16c] sm:$0xff]
          %v650 = vld [vmem:[#allocation10 + $0x174] sm:$0xff]
          %v651 = vld [vmem:[#allocation10 + $0x17c] sm:$0xff]
          %v652 = vld [vmem:[#allocation10 + $0x184] sm:$0xf]
          %v653 = vld [vmem:[#allocation10 + $0x188] sm:$0xff]
          %v654 = vld [vmem:[#allocation10 + $0x190] sm:$0xff]
          %v655 = vld [vmem:[#allocation10 + $0x198] sm:$0xff]
          %v656 = vld [vmem:[#allocation10 + $0x1a0] sm:$0xf]
          %v657 = vld [vmem:[#allocation10 + $0x1a4] sm:$0xff]
          %v658 = vld [vmem:[#allocation10 + $0x1ac] sm:$0xff]
          %v659 = vld [vmem:[#allocation10 + $0x1b4] sm:$0xff]
          %v660 = vld [vmem:[#allocation10 + $0x1bc] sm:$0xf]
          %v661 = vld [vmem:[#allocation10 + $0x1c0] sm:$0xff]
          %v662 = vld [vmem:[#allocation10 + $0x1c8] sm:$0xff]
          %v663 = vld [vmem:[#allocation10 + $0x1d0] sm:$0xff]
          %v664 = vld [vmem:[#allocation10 + $0x1d8] sm:$0xf]
          %v665 = vld [vmem:[#allocation10 + $0x1dc] sm:$0xff]
          %v666 = vld [vmem:[#allocation10 + $0x1e4] sm:$0xff]
          %v667 = vld [vmem:[#allocation10 + $0x1ec] sm:$0xff]
          %v668 = vld [vmem:[#allocation10 + $0x1f4] sm:$0xf]
          %v669 = vld [vmem:[#allocation10 + $0x1f8] sm:$0xff]
          %v670 = vld [vmem:[#allocation10 + $0x200] sm:$0xff]
          %v671 = vld [vmem:[#allocation10 + $0x208] sm:$0xff]
          %v672 = vld [vmem:[#allocation10 + $0x210] sm:$0xf]
          %v673 = vld [vmem:[#allocation10 + $0x214] sm:$0xff]
          %v674 = vld [vmem:[#allocation10 + $0x21c] sm:$0xff]
          %v675 = vld [vmem:[#allocation10 + $0x224] sm:$0xff]
          %v676 = vld [vmem:[#allocation10 + $0x22c] sm:$0xf]
          %v677 = vld [vmem:[#allocation10 + $0x230] sm:$0xff]
          %v678 = vld [vmem:[#allocation10 + $0x238] sm:$0xff]
          %v679 = vld [vmem:[#allocation10 + $0x240] sm:$0xff]
          %v680 = vld [vmem:[#allocation10 + $0x248] sm:$0xf]
          %v681 = vld [vmem:[#allocation10 + $0x24c] sm:$0xff]
          %v682 = vld [vmem:[#allocation10 + $0x254] sm:$0xff]
          %v683 = vld [vmem:[#allocation10 + $0x25c] sm:$0xff]
          %v684 = vld [vmem:[#allocation10 + $0x264] sm:$0xf]
          %v685 = vld [vmem:[#allocation10 + $0x268] sm:$0xff]
          %v686 = vld [vmem:[#allocation10 + $0x270] sm:$0xff]
          %v687 = vld [vmem:[#allocation10 + $0x278] sm:$0xff]
          %v688 = vld [vmem:[#allocation10 + $0x280] sm:$0xf]
          %v689 = vld [vmem:[#allocation10 + $0x284] sm:$0xff]
          %v690 = vld [vmem:[#allocation10 + $0x28c] sm:$0xff]
          %v691 = vld [vmem:[#allocation10 + $0x294] sm:$0xff]
          %v692 = vld [vmem:[#allocation10 + $0x29c] sm:$0xf]
          %v693 = vld [vmem:[#allocation10 + $0x2a0] sm:$0xff]
          %v694 = vld [vmem:[#allocation10 + $0x2a8] sm:$0xff]
          %v695 = vld [vmem:[#allocation10 + $0x2b0] sm:$0xff]
          %v696 = vld [vmem:[#allocation10 + $0x2b8] sm:$0xf]
          %v697 = vld [vmem:[#allocation10 + $0x2bc] sm:$0xff]
          %v698 = vld [vmem:[#allocation10 + $0x2c4] sm:$0xff]
          %v699 = vld [vmem:[#allocation10 + $0x2cc] sm:$0xff]
          %v700 = vld [vmem:[#allocation10 + $0x2d4] sm:$0xf]
          %v701 = vld [vmem:[#allocation10 + $0x2d8] sm:$0xff]
          %v702 = vld [vmem:[#allocation10 + $0x2e0] sm:$0xff]
          %v703 = vld [vmem:[#allocation10 + $0x2e8] sm:$0xff]
          %v704 = vld [vmem:[#allocation10 + $0x2f0] sm:$0xf]
          %v705 = vld [vmem:[#allocation10 + $0x2f4] sm:$0xff]
          %v706 = vld [vmem:[#allocation10 + $0x2fc] sm:$0xff]
          %v707 = vld [vmem:[#allocation10 + $0x304] sm:$0xff]
          %v708 = vld [vmem:[#allocation10 + $0x30c] sm:$0xf]
          %v709 = vld [vmem:[#allocation10 + $0x310] sm:$0xff]
          %v710 = vld [vmem:[#allocation10 + $0x318] sm:$0xff]
          %v711 = vld [vmem:[#allocation10 + $0x320] sm:$0xff]
          %v712 = vld [vmem:[#allocation10 + $0x328] sm:$0xf]
          %v713 = vld [vmem:[#allocation10 + $0x32c] sm:$0xff]
          %v714 = vld [vmem:[#allocation10 + $0x334] sm:$0xff]
          %v715 = vld [vmem:[#allocation10 + $0x33c] sm:$0xff]
          %v716 = vld [vmem:[#allocation10 + $0x344] sm:$0xf]
          %v717 = vld [vmem:[#allocation10 + $0x348] sm:$0xff]
          %v718 = vld [vmem:[#allocation10 + $0x350] sm:$0xff]
          %v719 = vld [vmem:[#allocation10 + $0x358] sm:$0xff]
          %v720 = vld [vmem:[#allocation10 + $0x360] sm:$0xf]
          %v721 = vld [vmem:[#allocation10 + $0x364] sm:$0xff]
          %v722 = vld [vmem:[#allocation10 + $0x36c] sm:$0xff]
          %v723 = vld [vmem:[#allocation10 + $0x374] sm:$0xff]
          %v724 = vld [vmem:[#allocation10 + $0x37c] sm:$0xf]
          %v725 = vld [vmem:[%s5] sm:$0xff]
          %v727 = vlaneseq
          %v728 = vshrl.u32 %v727, 7
          %v729 = vsub.s32 0, %v728
          %v730 = vrot.slane %v725, %v729
          %v731 = vlaneseq
          %v732 = vshrl.u32 %v731, 7
          %v733 = vsub.s32 1, %v732
          %v734 = vrot.slane %v725, %v733
          %v735 = vlaneseq
          %v736 = vshrl.u32 %v735, 7
          %v737 = vsub.s32 2, %v736
          %v738 = vrot.slane %v725, %v737
          %v739 = vlaneseq
          %v740 = vshrl.u32 %v739, 7
          %v741 = vsub.s32 3, %v740
          %v742 = vrot.slane %v725, %v741
          %v743 = vlaneseq
          %v744 = vshrl.u32 %v743, 7
          %v745 = vsub.s32 4, %v744
          %v746 = vrot.slane %v725, %v745
          %v747 = vlaneseq
          %v748 = vshrl.u32 %v747, 7
          %v749 = vsub.s32 5, %v748
          %v750 = vrot.slane %v725, %v749
          %v751 = vlaneseq
          %v752 = vshrl.u32 %v751, 7
          %v753 = vsub.s32 6, %v752
          %v754 = vrot.slane %v725, %v753
          %v890 = vunpack.c.l.b16 %v597
          %v891 = vunpack.c.h.b16 %v597
          %v892 = vunpack.c.l.b16 %v598
          %v893 = vunpack.c.h.b16 %v598
          %v894 = vunpack.c.l.b16 %v599
          %v895 = vunpack.c.h.b16 %v599
          %v896 = vunpack.c.l.b16 %v600
          %v897 = vunpack.c.l.b16 %v601
          %v898 = vunpack.c.h.b16 %v601
          %v899 = vunpack.c.l.b16 %v602
          %v900 = vunpack.c.h.b16 %v602
          %v901 = vunpack.c.l.b16 %v603
          %v902 = vunpack.c.h.b16 %v603
          %v903 = vunpack.c.l.b16 %v604
          %v904 = vunpack.c.l.b16 %v605
          %v905 = vunpack.c.h.b16 %v605
          %v906 = vunpack.c.l.b16 %v606
          %v907 = vunpack.c.h.b16 %v606
          %v908 = vunpack.c.l.b16 %v607
          %v909 = vunpack.c.h.b16 %v607
          %v910 = vunpack.c.l.b16 %v608
          %v911 = vunpack.c.l.b16 %v609
          %v912 = vunpack.c.h.b16 %v609
          %v913 = vunpack.c.l.b16 %v610
          %v914 = vunpack.c.h.b16 %v610
          %v915 = vunpack.c.l.b16 %v611
          %v916 = vunpack.c.h.b16 %v611
          %v917 = vunpack.c.l.b16 %v612
          %v918 = vunpack.c.l.b16 %v613
          %v919 = vunpack.c.h.b16 %v613
          %v920 = vunpack.c.l.b16 %v614
          %v921 = vunpack.c.h.b16 %v614
          %v922 = vunpack.c.l.b16 %v615
          %v923 = vunpack.c.h.b16 %v615
          %v924 = vunpack.c.l.b16 %v616
          %v925 = vunpack.c.l.b16 %v617
          %v926 = vunpack.c.h.b16 %v617
          %v927 = vunpack.c.l.b16 %v618
          %v928 = vunpack.c.h.b16 %v618
          %v929 = vunpack.c.l.b16 %v619
          %v930 = vunpack.c.h.b16 %v619
          %v931 = vunpack.c.l.b16 %v620
          %v932 = vunpack.c.l.b16 %v621
          %v933 = vunpack.c.h.b16 %v621
          %v934 = vunpack.c.l.b16 %v622
          %v935 = vunpack.c.h.b16 %v622
          %v936 = vunpack.c.l.b16 %v623
          %v937 = vunpack.c.h.b16 %v623
          %v938 = vunpack.c.l.b16 %v624
          %v939 = vunpack.c.l.b16 %v625
          %v940 = vunpack.c.h.b16 %v625
          %v941 = vunpack.c.l.b16 %v626
          %v942 = vunpack.c.h.b16 %v626
          %v943 = vunpack.c.l.b16 %v627
          %v944 = vunpack.c.h.b16 %v627
          %v945 = vunpack.c.l.b16 %v628
          %v946 = vunpack.c.l.b16 %v629
          %v947 = vunpack.c.h.b16 %v629
          %v948 = vunpack.c.l.b16 %v630
          %v949 = vunpack.c.h.b16 %v630
          %v950 = vunpack.c.l.b16 %v631
          %v951 = vunpack.c.h.b16 %v631
          %v952 = vunpack.c.l.b16 %v632
          %v953 = vunpack.c.l.b16 %v633
          %v954 = vunpack.c.h.b16 %v633
          %v955 = vunpack.c.l.b16 %v634
          %v956 = vunpack.c.h.b16 %v634
          %v957 = vunpack.c.l.b16 %v635
          %v958 = vunpack.c.h.b16 %v635
          %v959 = vunpack.c.l.b16 %v636
          %v960 = vunpack.c.l.b16 %v637
          %v961 = vunpack.c.h.b16 %v637
          %v962 = vunpack.c.l.b16 %v638
          %v963 = vunpack.c.h.b16 %v638
          %v964 = vunpack.c.l.b16 %v639
          %v965 = vunpack.c.h.b16 %v639
          %v966 = vunpack.c.l.b16 %v640
          %v967 = vunpack.c.l.b16 %v641
          %v968 = vunpack.c.h.b16 %v641
          %v969 = vunpack.c.l.b16 %v642
          %v970 = vunpack.c.h.b16 %v642
          %v971 = vunpack.c.l.b16 %v643
          %v972 = vunpack.c.h.b16 %v643
          %v973 = vunpack.c.l.b16 %v644
          %v974 = vunpack.c.l.b16 %v645
          %v975 = vunpack.c.h.b16 %v645
          %v976 = vunpack.c.l.b16 %v646
          %v977 = vunpack.c.h.b16 %v646
          %v978 = vunpack.c.l.b16 %v647
          %v979 = vunpack.c.h.b16 %v647
          %v980 = vunpack.c.l.b16 %v648
          %v981 = vunpack.c.l.b16 %v649
          %v982 = vunpack.c.h.b16 %v649
          %v983 = vunpack.c.l.b16 %v650
          %v984 = vunpack.c.h.b16 %v650
          %v985 = vunpack.c.l.b16 %v651
          %v986 = vunpack.c.h.b16 %v651
          %v987 = vunpack.c.l.b16 %v652
          %v988 = vunpack.c.l.b16 %v653
          %v989 = vunpack.c.h.b16 %v653
          %v990 = vunpack.c.l.b16 %v654
          %v991 = vunpack.c.h.b16 %v654
          %v992 = vunpack.c.l.b16 %v655
          %v993 = vunpack.c.h.b16 %v655
          %v994 = vunpack.c.l.b16 %v656
          %v995 = vunpack.c.l.b16 %v657
          %v996 = vunpack.c.h.b16 %v657
          %v997 = vunpack.c.l.b16 %v658
          %v998 = vunpack.c.h.b16 %v658
          %v999 = vunpack.c.l.b16 %v659
          %v1000 = vunpack.c.h.b16 %v659
          %v1001 = vunpack.c.l.b16 %v660
          %v1002 = vunpack.c.l.b16 %v661
          %v1003 = vunpack.c.h.b16 %v661
          %v1004 = vunpack.c.l.b16 %v662
          %v1005 = vunpack.c.h.b16 %v662
          %v1006 = vunpack.c.l.b16 %v663
          %v1007 = vunpack.c.h.b16 %v663
          %v1008 = vunpack.c.l.b16 %v664
          %v1009 = vunpack.c.l.b16 %v665
          %v1010 = vunpack.c.h.b16 %v665
          %v1011 = vunpack.c.l.b16 %v666
          %v1012 = vunpack.c.h.b16 %v666
          %v1013 = vunpack.c.l.b16 %v667
          %v1014 = vunpack.c.h.b16 %v667
          %v1015 = vunpack.c.l.b16 %v668
          %v1016 = vunpack.c.l.b16 %v669
          %v1017 = vunpack.c.h.b16 %v669
          %v1018 = vunpack.c.l.b16 %v670
          %v1019 = vunpack.c.h.b16 %v670
          %v1020 = vunpack.c.l.b16 %v671
          %v1021 = vunpack.c.h.b16 %v671
          %v1022 = vunpack.c.l.b16 %v672
          %v1023 = vunpack.c.l.b16 %v673
          %v1024 = vunpack.c.h.b16 %v673
          %v1025 = vunpack.c.l.b16 %v674
          %v1026 = vunpack.c.h.b16 %v674
          %v1027 = vunpack.c.l.b16 %v675
          %v1028 = vunpack.c.h.b16 %v675
          %v1029 = vunpack.c.l.b16 %v676
          %v1030 = vunpack.c.l.b16 %v677
          %v1031 = vunpack.c.h.b16 %v677
          %v1032 = vunpack.c.l.b16 %v678
          %v1033 = vunpack.c.h.b16 %v678
          %v1034 = vunpack.c.l.b16 %v679
          %v1035 = vunpack.c.h.b16 %v679
          %v1036 = vunpack.c.l.b16 %v680
          %v1037 = vunpack.c.l.b16 %v681
          %v1038 = vunpack.c.h.b16 %v681
          %v1039 = vunpack.c.l.b16 %v682
          %v1040 = vunpack.c.h.b16 %v682
          %v1041 = vunpack.c.l.b16 %v683
          %v1042 = vunpack.c.h.b16 %v683
          %v1043 = vunpack.c.l.b16 %v684
          %v1044 = vunpack.c.l.b16 %v685
          %v1045 = vunpack.c.h.b16 %v685
          %v1046 = vunpack.c.l.b16 %v686
          %v1047 = vunpack.c.h.b16 %v686
          %v1048 = vunpack.c.l.b16 %v687
          %v1049 = vunpack.c.h.b16 %v687
          %v1050 = vunpack.c.l.b16 %v688
          %v1051 = vunpack.c.l.b16 %v689
          %v1052 = vunpack.c.h.b16 %v689
          %v1053 = vunpack.c.l.b16 %v690
          %v1054 = vunpack.c.h.b16 %v690
          %v1055 = vunpack.c.l.b16 %v691
          %v1056 = vunpack.c.h.b16 %v691
          %v1057 = vunpack.c.l.b16 %v692
          %v1058 = vunpack.c.l.b16 %v693
          %v1059 = vunpack.c.h.b16 %v693
          %v1060 = vunpack.c.l.b16 %v694
          %v1061 = vunpack.c.h.b16 %v694
          %v1062 = vunpack.c.l.b16 %v695
          %v1063 = vunpack.c.h.b16 %v695
          %v1064 = vunpack.c.l.b16 %v696
          %v1065 = vunpack.c.l.b16 %v697
          %v1066 = vunpack.c.h.b16 %v697
          %v1067 = vunpack.c.l.b16 %v698
          %v1068 = vunpack.c.h.b16 %v698
          %v1069 = vunpack.c.l.b16 %v699
          %v1070 = vunpack.c.h.b16 %v699
          %v1071 = vunpack.c.l.b16 %v700
          %v1072 = vunpack.c.l.b16 %v701
          %v1073 = vunpack.c.h.b16 %v701
          %v1074 = vunpack.c.l.b16 %v702
          %v1075 = vunpack.c.h.b16 %v702
          %v1076 = vunpack.c.l.b16 %v703
          %v1077 = vunpack.c.h.b16 %v703
          %v1078 = vunpack.c.l.b16 %v704
          %v1079 = vunpack.c.l.b16 %v705
          %v1080 = vunpack.c.h.b16 %v705
          %v1081 = vunpack.c.l.b16 %v706
          %v1082 = vunpack.c.h.b16 %v706
          %v1083 = vunpack.c.l.b16 %v707
          %v1084 = vunpack.c.h.b16 %v707
          %v1085 = vunpack.c.l.b16 %v708
          %v1086 = vunpack.c.l.b16 %v709
          %v1087 = vunpack.c.h.b16 %v709
          %v1088 = vunpack.c.l.b16 %v710
          %v1089 = vunpack.c.h.b16 %v710
          %v1090 = vunpack.c.l.b16 %v711
          %v1091 = vunpack.c.h.b16 %v711
          %v1092 = vunpack.c.l.b16 %v712
          %v1093 = vunpack.c.l.b16 %v713
          %v1094 = vunpack.c.h.b16 %v713
          %v1095 = vunpack.c.l.b16 %v714
          %v1096 = vunpack.c.h.b16 %v714
          %v1097 = vunpack.c.l.b16 %v715
          %v1098 = vunpack.c.h.b16 %v715
          %v1099 = vunpack.c.l.b16 %v716
          %v1100 = vunpack.c.l.b16 %v717
          %v1101 = vunpack.c.h.b16 %v717
          %v1102 = vunpack.c.l.b16 %v718
          %v1103 = vunpack.c.h.b16 %v718
          %v1104 = vunpack.c.l.b16 %v719
          %v1105 = vunpack.c.h.b16 %v719
          %v1106 = vunpack.c.l.b16 %v720
          %v1107 = vunpack.c.l.b16 %v721
          %v1108 = vunpack.c.h.b16 %v721
          %v1109 = vunpack.c.l.b16 %v722
          %v1110 = vunpack.c.h.b16 %v722
          %v1111 = vunpack.c.l.b16 %v723
          %v1112 = vunpack.c.h.b16 %v723
          %v1113 = vunpack.c.l.b16 %v724
          %v1114 = vpack.c.b16 %v897, %v890
          %v1115 = vpack.c.b16 %v898, %v891
          %v1116 = vpack.c.b16 %v899, %v892
          %v1117 = vpack.c.b16 %v900, %v893
          %v1118 = vpack.c.b16 %v901, %v894
          %v1119 = vpack.c.b16 %v902, %v895
          %v1120 = vpack.c.b16 %v903, %v896
          %v1121 = vpack.c.b16 %v911, %v904
          %v1122 = vpack.c.b16 %v912, %v905
          %v1123 = vpack.c.b16 %v913, %v906
          %v1124 = vpack.c.b16 %v914, %v907
          %v1125 = vpack.c.b16 %v915, %v908
          %v1126 = vpack.c.b16 %v916, %v909
          %v1127 = vpack.c.b16 %v917, %v910
          %v1128 = vpack.c.b16 %v925, %v918
          %v1129 = vpack.c.b16 %v926, %v919
          %v1130 = vpack.c.b16 %v927, %v920
          %v1131 = vpack.c.b16 %v928, %v921
          %v1132 = vpack.c.b16 %v929, %v922
          %v1133 = vpack.c.b16 %v930, %v923
          %v1134 = vpack.c.b16 %v931, %v924
          %v1135 = vpack.c.b16 %v939, %v932
          %v1136 = vpack.c.b16 %v940, %v933
          %v1137 = vpack.c.b16 %v941, %v934
          %v1138 = vpack.c.b16 %v942, %v935
          %v1139 = vpack.c.b16 %v943, %v936
          %v1140 = vpack.c.b16 %v944, %v937
          %v1141 = vpack.c.b16 %v945, %v938
          %v1142 = vpack.c.b16 %v953, %v946
          %v1143 = vpack.c.b16 %v954, %v947
          %v1144 = vpack.c.b16 %v955, %v948
          %v1145 = vpack.c.b16 %v956, %v949
          %v1146 = vpack.c.b16 %v957, %v950
          %v1147 = vpack.c.b16 %v958, %v951
          %v1148 = vpack.c.b16 %v959, %v952
          %v1149 = vpack.c.b16 %v967, %v960
          %v1150 = vpack.c.b16 %v968, %v961
          %v1151 = vpack.c.b16 %v969, %v962
          %v1152 = vpack.c.b16 %v970, %v963
          %v1153 = vpack.c.b16 %v971, %v964
          %v1154 = vpack.c.b16 %v972, %v965
          %v1155 = vpack.c.b16 %v973, %v966
          %v1156 = vpack.c.b16 %v981, %v974
          %v1157 = vpack.c.b16 %v982, %v975
          %v1158 = vpack.c.b16 %v983, %v976
          %v1159 = vpack.c.b16 %v984, %v977
          %v1160 = vpack.c.b16 %v985, %v978
          %v1161 = vpack.c.b16 %v986, %v979
          %v1162 = vpack.c.b16 %v987, %v980
          %v1163 = vpack.c.b16 %v995, %v988
          %v1164 = vpack.c.b16 %v996, %v989
          %v1165 = vpack.c.b16 %v997, %v990
          %v1166 = vpack.c.b16 %v998, %v991
          %v1167 = vpack.c.b16 %v999, %v992
          %v1168 = vpack.c.b16 %v1000, %v993
          %v1169 = vpack.c.b16 %v1001, %v994
          %v1170 = vpack.c.b16 %v1009, %v1002
          %v1171 = vpack.c.b16 %v1010, %v1003
          %v1172 = vpack.c.b16 %v1011, %v1004
          %v1173 = vpack.c.b16 %v1012, %v1005
          %v1174 = vpack.c.b16 %v1013, %v1006
          %v1175 = vpack.c.b16 %v1014, %v1007
          %v1176 = vpack.c.b16 %v1015, %v1008
          %v1177 = vpack.c.b16 %v1023, %v1016
          %v1178 = vpack.c.b16 %v1024, %v1017
          %v1179 = vpack.c.b16 %v1025, %v1018
          %v1180 = vpack.c.b16 %v1026, %v1019
          %v1181 = vpack.c.b16 %v1027, %v1020
          %v1182 = vpack.c.b16 %v1028, %v1021
          %v1183 = vpack.c.b16 %v1029, %v1022
          %v1184 = vpack.c.b16 %v1037, %v1030
          %v1185 = vpack.c.b16 %v1038, %v1031
          %v1186 = vpack.c.b16 %v1039, %v1032
          %v1187 = vpack.c.b16 %v1040, %v1033
          %v1188 = vpack.c.b16 %v1041, %v1034
          %v1189 = vpack.c.b16 %v1042, %v1035
          %v1190 = vpack.c.b16 %v1043, %v1036
          %v1191 = vpack.c.b16 %v1051, %v1044
          %v1192 = vpack.c.b16 %v1052, %v1045
          %v1193 = vpack.c.b16 %v1053, %v1046
          %v1194 = vpack.c.b16 %v1054, %v1047
          %v1195 = vpack.c.b16 %v1055, %v1048
          %v1196 = vpack.c.b16 %v1056, %v1049
          %v1197 = vpack.c.b16 %v1057, %v1050
          %v1198 = vpack.c.b16 %v1065, %v1058
          %v1199 = vpack.c.b16 %v1066, %v1059
          %v1200 = vpack.c.b16 %v1067, %v1060
          %v1201 = vpack.c.b16 %v1068, %v1061
          %v1202 = vpack.c.b16 %v1069, %v1062
          %v1203 = vpack.c.b16 %v1070, %v1063
          %v1204 = vpack.c.b16 %v1071, %v1064
          %v1205 = vpack.c.b16 %v1079, %v1072
          %v1206 = vpack.c.b16 %v1080, %v1073
          %v1207 = vpack.c.b16 %v1081, %v1074
          %v1208 = vpack.c.b16 %v1082, %v1075
          %v1209 = vpack.c.b16 %v1083, %v1076
          %v1210 = vpack.c.b16 %v1084, %v1077
          %v1211 = vpack.c.b16 %v1085, %v1078
          %v1212 = vpack.c.b16 %v1093, %v1086
          %v1213 = vpack.c.b16 %v1094, %v1087
          %v1214 = vpack.c.b16 %v1095, %v1088
          %v1215 = vpack.c.b16 %v1096, %v1089
          %v1216 = vpack.c.b16 %v1097, %v1090
          %v1217 = vpack.c.b16 %v1098, %v1091
          %v1218 = vpack.c.b16 %v1099, %v1092
          %v1219 = vpack.c.b16 %v1107, %v1100
          %v1220 = vpack.c.b16 %v1108, %v1101
          %v1221 = vpack.c.b16 %v1109, %v1102
          %v1222 = vpack.c.b16 %v1110, %v1103
          %v1223 = vpack.c.b16 %v1111, %v1104
          %v1224 = vpack.c.b16 %v1112, %v1105
          %v1225 = vpack.c.b16 %v1113, %v1106
          %1338 = vmatprep.subr.bf16.mxu0 %v1115
          %1339 = vmatpush1.bf16.msra.mxu0 %v1114
          %1340 = vmatprep.subr.bf16.mxu0 %v1122
          %1341 = vmatpush1.bf16.msra.mxu0 %v1121
          %1342 = vmatprep.subr.bf16.mxu0 %v1129
          %1343 = vmatpush1.bf16.msra.mxu0 %v1128
          %1344 = vmatprep.subr.bf16.mxu0 %v1136
          %1345 = vmatpush1.bf16.msra.mxu0 %v1135
          %1346 = vmatprep.subr.bf16.mxu0 %v1143
          %1347 = vmatpush1.bf16.msra.mxu0 %v1142
          %1348 = vmatprep.subr.bf16.mxu0 %v1150
          %1349 = vmatpush1.bf16.msra.mxu0 %v1149
          %1350 = vmatprep.subr.bf16.mxu0 %v1157
          %1351 = vmatpush1.bf16.msra.mxu0 %v1156
          %1352 = vmatprep.subr.bf16.mxu0 %v1164
          %1353 = vmatpush1.bf16.msra.mxu0 %v1163
          %1354 = vmatprep.subr.bf16.mxu0 %v1171
          %1355 = vmatpush1.bf16.msra.mxu0 %v1170
          %1356 = vmatprep.subr.bf16.mxu0 %v1178
          %1357 = vmatpush1.bf16.msra.mxu0 %v1177
          %1358 = vmatprep.subr.bf16.mxu0 %v1185
          %1359 = vmatpush1.bf16.msra.mxu0 %v1184
          %1360 = vmatprep.subr.bf16.mxu0 %v1192
          %1361 = vmatpush1.bf16.msra.mxu0 %v1191
          %1362 = vmatprep.subr.bf16.mxu0 %v1199
          %1363 = vmatpush1.bf16.msra.mxu0 %v1198
          %1364 = vmatprep.subr.bf16.mxu0 %v1206
          %1365 = vmatpush1.bf16.msra.mxu0 %v1205
          %1366 = vmatprep.subr.bf16.mxu0 %v1213
          %1367 = vmatpush1.bf16.msra.mxu0 %v1212
          %1368 = vmatprep.subr.bf16.mxu0 %v1220
          %1369 = vmatpush1.bf16.msra.mxu0 %v1219
          %1370 = vmatprep.mubr.bf16.mxu0 %v596
          %1371 = vmatmul.mubr.bf16.gmra.mrb[0].mxu0 %v595
          %v1372 = vpop.f32.mrb[0].mxu0
          %v1373 = vadd.f32 %v730, %v1372
          %v1374 = vpop.f32.mrb[0].mxu0
          %v1375 = vadd.f32 %v734, %v1374
          %v1376 = vpop.f32.mrb[0].mxu0
          %v1377 = vpop.f32.mrb[0].mxu0
          %1378 = vdwg.mxu0
          %1379 = vmatprep.subr.bf16.mxu0 %v1117
          %1380 = vmatpush1.bf16.msra.mxu0 %v1116
          %1381 = vmatprep.subr.bf16.mxu0 %v1124
          %1382 = vmatpush1.bf16.msra.mxu0 %v1123
          %1383 = vmatprep.subr.bf16.mxu0 %v1131
          %1384 = vmatpush1.bf16.msra.mxu0 %v1130
          %1385 = vmatprep.subr.bf16.mxu0 %v1138
          %1386 = vmatpush1.bf16.msra.mxu0 %v1137
          %1387 = vmatprep.subr.bf16.mxu0 %v1145
          %1388 = vmatpush1.bf16.msra.mxu0 %v1144
          %1389 = vmatprep.subr.bf16.mxu0 %v1152
          %1390 = vmatpush1.bf16.msra.mxu0 %v1151
          %1391 = vmatprep.subr.bf16.mxu0 %v1159
          %1392 = vmatpush1.bf16.msra.mxu0 %v1158
          %1393 = vmatprep.subr.bf16.mxu0 %v1166
          %1394 = vmatpush1.bf16.msra.mxu0 %v1165
          %1395 = vmatprep.subr.bf16.mxu0 %v1173
          %1396 = vmatpush1.bf16.msra.mxu0 %v1172
          %1397 = vmatprep.subr.bf16.mxu0 %v1180
          %1398 = vmatpush1.bf16.msra.mxu0 %v1179
          %1399 = vmatprep.subr.bf16.mxu0 %v1187
          %1400 = vmatpush1.bf16.msra.mxu0 %v1186
          %1401 = vmatprep.subr.bf16.mxu0 %v1194
          %1402 = vmatpush1.bf16.msra.mxu0 %v1193
          %1403 = vmatprep.subr.bf16.mxu0 %v1201
          %1404 = vmatpush1.bf16.msra.mxu0 %v1200
          %1405 = vmatprep.subr.bf16.mxu0 %v1208
          %1406 = vmatpush1.bf16.msra.mxu0 %v1207
          %1407 = vmatprep.subr.bf16.mxu0 %v1215
          %1408 = vmatpush1.bf16.msra.mxu0 %v1214
          %1409 = vmatprep.subr.bf16.mxu0 %v1222
          %1410 = vmatpush1.bf16.msra.mxu0 %v1221
          %1411 = vmatprep.mubr.bf16.mxu0 %v596
          %1412 = vmatmul.mubr.bf16.gmra.mrb[0].mxu0 %v595
          %v1413 = vpop.f32.mrb[0].mxu0
          %v1414 = vadd.f32 %v738, %v1413
          %v1415 = vpop.f32.mrb[0].mxu0
          %v1416 = vadd.f32 %v742, %v1415
          %v1417 = vpop.f32.mrb[0].mxu0
          %v1418 = vpop.f32.mrb[0].mxu0
          %1419 = vdwg.mxu0
          %1420 = vmatprep.subr.bf16.mxu0 %v1119
          %1421 = vmatpush1.bf16.msra.mxu0 %v1118
          %1422 = vmatprep.subr.bf16.mxu0 %v1126
          %1423 = vmatpush1.bf16.msra.mxu0 %v1125
          %1424 = vmatprep.subr.bf16.mxu0 %v1133
          %1425 = vmatpush1.bf16.msra.mxu0 %v1132
          %1426 = vmatprep.subr.bf16.mxu0 %v1140
          %1427 = vmatpush1.bf16.msra.mxu0 %v1139
          %1428 = vmatprep.subr.bf16.mxu0 %v1147
          %1429 = vmatpush1.bf16.msra.mxu0 %v1146
          %1430 = vmatprep.subr.bf16.mxu0 %v1154
          %1431 = vmatpush1.bf16.msra.mxu0 %v1153
          %1432 = vmatprep.subr.bf16.mxu0 %v1161
          %1433 = vmatpush1.bf16.msra.mxu0 %v1160
          %1434 = vmatprep.subr.bf16.mxu0 %v1168
          %1435 = vmatpush1.bf16.msra.mxu0 %v1167
          %1436 = vmatprep.subr.bf16.mxu0 %v1175
          %1437 = vmatpush1.bf16.msra.mxu0 %v1174
          %1438 = vmatprep.subr.bf16.mxu0 %v1182
          %1439 = vmatpush1.bf16.msra.mxu0 %v1181
          %1440 = vmatprep.subr.bf16.mxu0 %v1189
          %1441 = vmatpush1.bf16.msra.mxu0 %v1188
          %1442 = vmatprep.subr.bf16.mxu0 %v1196
          %1443 = vmatpush1.bf16.msra.mxu0 %v1195
          %1444 = vmatprep.subr.bf16.mxu0 %v1203
          %1445 = vmatpush1.bf16.msra.mxu0 %v1202
          %1446 = vmatprep.subr.bf16.mxu0 %v1210
          %1447 = vmatpush1.bf16.msra.mxu0 %v1209
          %1448 = vmatprep.subr.bf16.mxu0 %v1217
          %1449 = vmatpush1.bf16.msra.mxu0 %v1216
          %1450 = vmatprep.subr.bf16.mxu0 %v1224
          %1451 = vmatpush1.bf16.msra.mxu0 %v1223
          %1452 = vmatprep.mubr.bf16.mxu0 %v596
          %1453 = vmatmul.mubr.bf16.gmra.mrb[0].mxu0 %v595
          %v1454 = vpop.f32.mrb[0].mxu0
          %v1455 = vadd.f32 %v746, %v1454
          %v1456 = vpop.f32.mrb[0].mxu0
          %v1457 = vadd.f32 %v750, %v1456
          %v1458 = vpop.f32.mrb[0].mxu0
          %v1459 = vpop.f32.mrb[0].mxu0
          %1460 = vdwg.mxu0
          %1461 = vmatprep.subr.bf16.mxu0 0
          %1462 = vmatpush1.bf16.msra.mxu0 %v1120
          %1463 = vmatprep.subr.bf16.mxu0 0
          %1464 = vmatpush1.bf16.msra.mxu0 %v1127
          %1465 = vmatprep.subr.bf16.mxu0 0
          %1466 = vmatpush1.bf16.msra.mxu0 %v1134
          %1467 = vmatprep.subr.bf16.mxu0 0
          %1468 = vmatpush1.bf16.msra.mxu0 %v1141
          %1469 = vmatprep.subr.bf16.mxu0 0
          %1470 = vmatpush1.bf16.msra.mxu0 %v1148
          %1471 = vmatprep.subr.bf16.mxu0 0
          %1472 = vmatpush1.bf16.msra.mxu0 %v1155
          %1473 = vmatprep.subr.bf16.mxu0 0
          %1474 = vmatpush1.bf16.msra.mxu0 %v1162
          %1475 = vmatprep.subr.bf16.mxu0 0
          %1476 = vmatpush1.bf16.msra.mxu0 %v1169
          %1477 = vmatprep.subr.bf16.mxu0 0
          %1478 = vmatpush1.bf16.msra.mxu0 %v1176
          %1479 = vmatprep.subr.bf16.mxu0 0
          %1480 = vmatpush1.bf16.msra.mxu0 %v1183
          %1481 = vmatprep.subr.bf16.mxu0 0
          %1482 = vmatpush1.bf16.msra.mxu0 %v1190
          %1483 = vmatprep.subr.bf16.mxu0 0
          %1484 = vmatpush1.bf16.msra.mxu0 %v1197
          %1485 = vmatprep.subr.bf16.mxu0 0
          %1486 = vmatpush1.bf16.msra.mxu0 %v1204
          %1487 = vmatprep.subr.bf16.mxu0 0
          %1488 = vmatpush1.bf16.msra.mxu0 %v1211
          %1489 = vmatprep.subr.bf16.mxu0 0
          %1490 = vmatpush1.bf16.msra.mxu0 %v1218
          %1491 = vmatprep.subr.bf16.mxu0 0
          %1492 = vmatpush1.bf16.msra.mxu0 %v1225
          %1493 = vmatprep.mubr.bf16.mxu0 %v596
          %1494 = vmatmul.mubr.bf16.gmra.mrb[0].mxu0 %v595
          %v1495 = vpop.f32.mrb[0].mxu0
          %v1496 = vadd.f32 %v754, %v1495
          %v1497 = vpop.f32.mrb[0].mxu0
          %v1498 = vpop.f32.mrb[0].mxu0
          %v1499 = vpop.f32.mrb[0].mxu0
          %1500 = vdwg.mxu0
          %v1501 = vsub.f32 0.0, %v1373
          %v1502 = vsub.f32 0.0, %v1375
          %v1503 = vsub.f32 0.0, %v1414
          %v1504 = vsub.f32 0.0, %v1416
          %v1505 = vsub.f32 0.0, %v1455
          %v1506 = vsub.f32 0.0, %v1457
          %v1507 = vsub.f32 0.0, %v1496
          %v1508 = vmul.f32 %v1501, 1.442695
          %v1509 = vpow.pop %v1508
          %v1510 = vmul.f32 %v1502, 1.442695
          %v1511 = vpow.pop %v1510
          %v1512 = vmul.f32 %v1503, 1.442695
          %v1513 = vpow.pop %v1512
          %v1514 = vmul.f32 %v1504, 1.442695
          %v1515 = vpow.pop %v1514
          %v1516 = vmul.f32 %v1505, 1.442695
          %v1517 = vpow.pop %v1516
          %v1518 = vmul.f32 %v1506, 1.442695
          %v1519 = vpow.pop %v1518
          %v1520 = vmul.f32 %v1507, 1.442695
          %v1521 = vpow.pop %v1520
          %v1522 = vadd.f32 %v1509, 1.0
          %v1523 = vadd.f32 %v1511, 1.0
          %v1524 = vadd.f32 %v1513, 1.0
          %v1525 = vadd.f32 %v1515, 1.0
          %v1526 = vadd.f32 %v1517, 1.0
          %v1527 = vadd.f32 %v1519, 1.0
          %v1528 = vadd.f32 %v1521, 1.0
          %v1529 = vrcp.pop %v1522
          %v1530 = vrcp.pop %v1523
          %v1531 = vrcp.pop %v1524
          %v1532 = vrcp.pop %v1525
          %v1533 = vrcp.pop %v1526
          %v1534 = vrcp.pop %v1527
          %v1535 = vrcp.pop %v1528
          %1536 = vst [vmem:[%s307] sm:$0xff] %v1529
          %1537 = vst [vmem:[%s307 + $0x8] sm:$0xff] %v1530
          %1538 = vst [vmem:[%s307 + $0x10] sm:$0xff] %v1531
          %1539 = vst [vmem:[%s307 + $0x18] sm:$0xff] %v1532
          %1540 = vst [vmem:[%s307 + $0x20] sm:$0xff] %v1533
          %1541 = vst [vmem:[%s307 + $0x28] sm:$0xff] %v1534
          %1542 = vst [vmem:[%s307 + $0x30] sm:$0xff] %v1535
        $region68: #{tpu_custom_call.1} parent=43 // pred_fallthru
          _
        %s1543 = sand.u32 %s175, 1
        %s1544 = scalar_lea.sflag [#allocation7], %s1543
        %s1545 = sand.u32 %s175, 1
        %s1546 = smul.addr %s1545, 56
        %s1547 = scalar_lea.vmem [#allocation11], %s1546
        // Predicated region
        $region69: #{tpu_custom_call.1} parent=43 // pred_check
          %p1548 = pneg %p185
        $region70: #{tpu_custom_call.1} parent=43 // pred_check_branch
          %1550 = sbr.rel (%p1548) target = $region72
        $region71: #{tpu_custom_call.1} parent=43 // pred_region
          %s1552 = ssub.s32 896, 896
          %1553 = vsyncadd %s1544, %s1552
          %s1554 = smul.addr %s29, 7
          %s1555 = smul.addr %s1554, 128
          %s1556 = scalar_lea.hbm %s6, %s1555
          %s1558 = sshll.u32 %s1547, 4
          %s1559 = int_to_ptr.vmem [resolvable:$true] %s1558
          %1561 = dma.vmem_to_hbm [thread:$0]  %s1559, 896, %s1556, %s1544
        $region72: #{tpu_custom_call.1} parent=43 // pred_fallthru
          _
      $region44: #{tpu_custom_call.1} parent=5 // pred_fallthru
        _
      %p1562 = scmp.le.s32.totalorder 2, %s19
      // Predicated region
      $region73: #{tpu_custom_call.1} parent=5 // pred_check
        %p1563 = pneg %p1562
      $region74: #{tpu_custom_call.1} parent=5 // pred_check_branch
        %1565 = sbr.rel (%p1563) target = $region76
      $region75: #{tpu_custom_call.1} parent=5 // pred_region
        %s1566 = ssub.s32 %s19, 2
        // Predicated region
        $region77: #{tpu_custom_call.1} parent=75 // pred_check
          %p1567 = pneg %p191
        $region78: #{tpu_custom_call.1} parent=75 // pred_check_branch
          %1569 = sbr.rel (%p1567) target = $region80
        $region79: #{tpu_custom_call.1} parent=75 // pred_region
          %s1570 = sand.u32 %s176, 1
          %s1571 = scalar_lea.sflag [#allocation7], %s1570
          %s1572 = sand.u32 %s176, 1
          %s1573 = smul.addr %s1572, 56
          %s1574 = scalar_lea.vmem [#allocation11], %s1573
          %1575 = dma.done %s1571, 896
        $region80: #{tpu_custom_call.1} parent=75 // pred_fallthru
          _
      $region76: #{tpu_custom_call.1} parent=5 // pred_fallthru
        _
    $region6: #{tpu_custom_call.1} parent=1 // loop_footer
      %s23 = sadd.s32 1, %s19
    $region7: #{tpu_custom_call.1} parent=1 // loop_footer_branch
      %18 = sbr.rel target = $region3
    $region8: #{tpu_custom_call.1} parent=1 // loop_exit
      _
    %1576 = vsyncpa [#allocation6], 1
    %s1577 = scalar_lea.sflag [#allocation6], 1
    %1578 = vsyncpa %s1577, 1
    %1579 = vsyncpa [#allocation9], 1
    %1580 = vsyncpa [#allocation7], 1
    %s1581 = scalar_lea.sflag [#allocation7], 1
    %1582 = vsyncpa %s1581, 1

</llo_original>
